<compile_context>
chip_gen: v6e
topology: v6e:2x2x1
jax: 0.10.0
libtpu: 0.0.40
codegen_flags: <defaults>
</compile_context>

<pallas_src>
import functools
import math

import jax
import jax.numpy as jnp
from jax.experimental import pallas as pl
from jax.experimental.pallas import tpu as pltpu


# ---------------------------------------------------------------------------
# Fused Linear (x @ W + b) kernel — used for the QKV / KV / output projections.
# ---------------------------------------------------------------------------
def _linear_kernel(x_ref, w_ref, b_ref, o_ref):
    y = jnp.dot(
        x_ref[...],
        w_ref[...],
        preferred_element_type=jnp.float32,
        precision=jax.lax.Precision.HIGHEST,
    )
    o_ref[...] = (y + b_ref[...]).astype(o_ref.dtype)   # bias-add in f32 on the accumulator


def _pick_row_tile(m, target=256):
    """Largest divisor of m that is <= target and sublane (8) friendly."""
    if m <= target:
        return m
    t = target
    while t >= 8:
        if m % t == 0 and t % 8 == 0:
            return t
        t -= 1
    return m


def pallas_linear(x2d, w, b, *, row_tile_target=256):
    """x2d: (M, d_in), w: (d_in, d_out) (= torch weight transposed), b: (d_out,)."""
    m, d_in = x2d.shape
    d_out = w.shape[1]
    row_tile = _pick_row_tile(m, row_tile_target)
    b2d = b.reshape(1, d_out)

    cost = pl.CostEstimate(
        flops=2 * m * d_in * d_out,
        transcendentals=0,
        bytes_accessed=4 * (m * d_in + d_in * d_out + d_out + m * d_out),
    )
    return pl.pallas_call(
        _linear_kernel,
        out_shape=jax.ShapeDtypeStruct((m, d_out), x2d.dtype),
        grid_spec=pltpu.PrefetchScalarGridSpec(
            num_scalar_prefetch=0,
            grid=(m // row_tile,),
            in_specs=[
                pl.BlockSpec((row_tile, d_in), lambda i: (i, 0)),   # x rows (streamed)
                pl.BlockSpec((d_in, d_out), lambda i: (0, 0)),      # W (resident, fetched once)
                pl.BlockSpec((1, d_out), lambda i: (0, 0)),         # bias (resident)
            ],
            out_specs=pl.BlockSpec((row_tile, d_out), lambda i: (i, 0)),
        ),
        compiler_params=pltpu.CompilerParams(
            dimension_semantics=("parallel",)),
        cost_estimate=cost,
    )(x2d, w, b2d)


# ---------------------------------------------------------------------------
# Scaled-dot-product attention core: one grid step = one batch element,
# all heads computed together with batched einsums on the MXU.
# ---------------------------------------------------------------------------
def _attention_kernel(q_ref, k_ref, v_ref, mask_ref, o_ref, *, scale):
    # Blocks: q (h, Sq, d_k), k/v (h, Sk, d_k), mask (1, Sq, Sk) in {0, 1}.
    q = q_ref[...]
    k = k_ref[...]
    v = v_ref[...]
    s = jnp.einsum(
        "hqd,hkd->hqk", q, k,
        preferred_element_type=jnp.float32,
        precision=jax.lax.Precision.HIGHEST,
    ) * scale
    s = jnp.where(mask_ref[...] == 0.0, -1e9, s)           # masked_fill(mask == 0, -1e9)
    m = jnp.max(s, axis=-1, keepdims=True)
    p = jnp.exp(s - m)
    p = p / jnp.sum(p, axis=-1, keepdims=True)             # softmax over keys (f32)
    # TODO(synk): training-mode dropout on p not wired in (eval-mode identity).
    ctx = jnp.einsum(
        "hqk,hkd->hqd", p, v,
        preferred_element_type=jnp.float32,
        precision=jax.lax.Precision.HIGHEST,
    )
    o_ref[...] = ctx.astype(o_ref.dtype)


def pallas_attention(q, k, v, mask):
    """q: (B, h, Sq, d_k), k/v: (B, h, Sk, d_k), mask: (B, 1, Sq, Sk) of {0,1}."""
    bsz, h, sq, d_k = q.shape
    sk = k.shape[2]
    scale = 1.0 / math.sqrt(d_k)

    cost = pl.CostEstimate(
        flops=4 * bsz * h * sq * sk * d_k,
        transcendentals=bsz * h * sq * sk,
        bytes_accessed=4 * (q.size + k.size + v.size + mask.size + q.size),
    )
    kernel = functools.partial(_attention_kernel, scale=scale)
    return pl.pallas_call(
        kernel,
        out_shape=jax.ShapeDtypeStruct((bsz, h, sq, d_k), q.dtype),
        grid_spec=pltpu.PrefetchScalarGridSpec(
            num_scalar_prefetch=0,
            grid=(bsz,),
            in_specs=[
                pl.BlockSpec((None, h, sq, d_k), lambda b: (b, 0, 0, 0)),
                pl.BlockSpec((None, h, sk, d_k), lambda b: (b, 0, 0, 0)),
                pl.BlockSpec((None, h, sk, d_k), lambda b: (b, 0, 0, 0)),
                pl.BlockSpec((None, 1, sq, sk), lambda b: (b, 0, 0, 0)),
            ],
            out_specs=pl.BlockSpec((None, h, sq, d_k), lambda b: (b, 0, 0, 0)),
        ),
        compiler_params=pltpu.CompilerParams(
            dimension_semantics=("parallel",)),
        cost_estimate=cost,
    )(q, k, v, mask)


# ---------------------------------------------------------------------------
# Q/K/V projections — fuse launches when inputs alias.
# ---------------------------------------------------------------------------
def _project_qkv(q2d, k2d, v2d, wq, bq, wk, bk, wv, bv, *, same_qkv, same_kv):
    d = wq.shape[1]
    if same_qkv:
        # Self-attention: one (M, D) @ (D, 3D) matmul, x read once.
        w = jnp.concatenate([wq, wk, wv], axis=1)
        b = jnp.concatenate([bq, bk, bv], axis=0)
        qkv = pallas_linear(q2d, w, b)
        return qkv[:, :d], qkv[:, d:2 * d], qkv[:, 2 * d:]
    q = pallas_linear(q2d, wq, bq)
    if same_kv:
        # Encoder-decoder attention: fuse the K and V projections of memory.
        w = jnp.concatenate([wk, wv], axis=1)
        b = jnp.concatenate([bk, bv], axis=0)
        kv = pallas_linear(k2d, w, b)
        return q, kv[:, :d], kv[:, d:]
    return q, pallas_linear(k2d, wk, bk), pallas_linear(v2d, wv, bv)


# ---------------------------------------------------------------------------
# Full MultiHeadedAttention forward.
# ---------------------------------------------------------------------------
def multi_headed_attention(query, key, value, params, mask=None, *, h):
    """params = (wq, bq, wk, bk, wv, bv, wo, bo); w* stored as (in, out)."""
    wq, bq, wk, bk, wv, bv, wo, bo = params
    bsz, sq, d_model = query.shape
    sk = key.shape[1]
    assert d_model % h == 0
    d_k = d_model // h

    same_qkv = (query is key) and (key is value)
    same_kv = key is value

    q, k, v = _project_qkv(
        query.reshape(bsz * sq, d_model),
        key.reshape(bsz * sk, d_model),
        value.reshape(bsz * sk, d_model),
        wq, bq, wk, bk, wv, bv,
        same_qkv=same_qkv, same_kv=same_kv)

    # Split heads: (B, S, d_model) -> (B, h, S, d_k). Layout plumbing stays in
    # the XLA wrapper so in-kernel blocks remain simple rectangular tiles.
    q = q.reshape(bsz, sq, h, d_k).transpose(0, 2, 1, 3)
    k = k.reshape(bsz, sk, h, d_k).transpose(0, 2, 1, 3)
    v = v.reshape(bsz, sk, h, d_k).transpose(0, 2, 1, 3)

    if mask is None:
        mask4 = jnp.ones((bsz, 1, sq, sk), jnp.float32)
    else:
        # Mirror torch's mask.unsqueeze(1); broadcast over heads / query rows.
        mask4 = jnp.broadcast_to(
            jnp.asarray(mask, dtype=jnp.float32)[:, None, ...],
            (bsz, 1, sq, sk))

    ctx = pallas_attention(q, k, v, mask4)                   # (B, h, Sq, d_k)
    ctx = ctx.transpose(0, 2, 1, 3).reshape(bsz * sq, d_model)
    out = pallas_linear(ctx, wo, bo)
    return out.reshape(bsz, sq, d_model)


# ---------------------------------------------------------------------------
# Pure-JAX reference (same math as the PyTorch module, f32, highest precision).
# ---------------------------------------------------------------------------
def mha_reference(query, key, value, params, mask, h):
    wq, bq, wk, bk, wv, bv, wo, bo = params
    bsz, sq, d_model = query.shape
    d_k = d_model // h
    hp = jax.lax.Precision.HIGHEST

    def lin(x, w, b):
        return jnp.dot(x, w, precision=hp) + b

    q = lin(query, wq, bq).reshape(bsz, sq, h, d_k).transpose(0, 2, 1, 3)
    k = lin(key, wk, bk).reshape(bsz, -1, h, d_k).transpose(0, 2, 1, 3)
    v = lin(value, wv, bv).reshape(bsz, -1, h, d_k).transpose(0, 2, 1, 3)
    scores = jnp.einsum("bhqd,bhkd->bhqk", q, k, precision=hp) / math.sqrt(d_k)
    if mask is not None:
        scores = jnp.where(jnp.asarray(mask)[:, None, ...] == 0, -1e9, scores)
    p = jax.nn.softmax(scores, axis=-1)
    ctx = jnp.einsum("bhqk,bhkd->bhqd", p, v, precision=hp)
    ctx = ctx.transpose(0, 2, 1, 3).reshape(bsz, sq, d_model)
    return lin(ctx, wo, bo)


if __name__ == "__main__":
    # Small, deterministic setup. d_model = 128 keeps all lane dims dense.
    batch, seq, h, d_model = 2, 16, 4, 128     # d_k = 32
    seq_mem = 8                                # memory length for cross-attention test

    key0 = jax.random.PRNGKey(0)
    keys = jax.random.split(key0, 12)
    x = jax.random.normal(keys[0], (batch, seq, d_model), dtype=jnp.float32)
    mem = jax.random.normal(keys[9], (batch, seq_mem, d_model), dtype=jnp.float32)

    def init_linear(kw, kb):
        w = jax.random.normal(kw, (d_model, d_model), dtype=jnp.float32) / math.sqrt(d_model)
        b = jax.random.normal(kb, (d_model,), dtype=jnp.float32) * 0.01
        return w, b

    wq, bq = init_linear(keys[1], keys[2])
    wk, bk = init_linear(keys[3], keys[4])
    wv, bv = init_linear(keys[5], keys[6])
    wo, bo = init_linear(keys[7], keys[8])
    params = (wq, bq, wk, bk, wv, bv, wo, bo)

    # Padding-style mask: batch 0 attends to all 16 keys, batch 1 only to the first 12.
    lengths = jnp.array([seq, seq - 4])
    mask = (jnp.arange(seq)[None, None, :] < lengths[:, None, None]).astype(jnp.float32)  # (B, 1, Sk)
    # Mask for the cross-attention test over memory of length 8 (batch 1 sees 6).
    lengths_mem = jnp.array([seq_mem, seq_mem - 2])
    mask_mem = (jnp.arange(seq_mem)[None, None, :] < lengths_mem[:, None, None]).astype(jnp.float32)

    # Self-attention (fused QKV projection), with and without mask.
    out_masked = multi_headed_attention(x, x, x, params, mask=mask, h=h)
    out_nomask = multi_headed_attention(x, x, x, params, mask=None, h=h)
    # Cross-attention (separate Q, fused KV projection).
    out_cross = multi_headed_attention(x, mem, mem, params, mask=mask_mem, h=h)
    jax.block_until_ready((out_masked, out_nomask, out_cross))

    ref_masked = mha_reference(x, x, x, params, mask, h)
    ref_nomask = mha_reference(x, x, x, params, None, h)
    ref_cross = mha_reference(x, mem, mem, params, mask_mem, h)

    assert out_masked.shape == (batch, seq, d_model)
    assert out_cross.shape == (batch, seq, d_model)
    assert jnp.allclose(out_masked, ref_masked, atol=5e-3, rtol=5e-3)
    assert jnp.allclose(out_nomask, ref_nomask, atol=5e-3, rtol=5e-3)
    assert jnp.allclose(out_cross, ref_cross, atol=5e-3, rtol=5e-3)

    print("KERNEL_OK")
</pallas_src>

<mosaic_0001>
module attributes {stable_mosaic.version = 11 : i64} {
  func.func @_linear_kernel(%arg0: i32, %arg1: memref<32x128xf32, #tpu.memory_space<vmem>>, %arg2: memref<128x384xf32, #tpu.memory_space<vmem>>, %arg3: memref<1x384xf32, #tpu.memory_space<vmem>>, %arg4: memref<32x384xf32, #tpu.memory_space<vmem>>) attributes {dimension_semantics = [#tpu.dimension_semantics<parallel>], iteration_bounds = array<i64: 1>, scalar_prefetch = 0 : i64, scratch_operands = 0 : i64, tpu.core_type = #tpu.core_type<tc>, window_params = [{transform_indices = @transform_0, window_bounds = array<i64: 32, 128>}, {pipeline_mode = #tpu.pipeline_mode<synchronous>, transform_indices = @transform_1, window_bounds = array<i64: 128, 384>}, {pipeline_mode = #tpu.pipeline_mode<synchronous>, transform_indices = @transform_2, window_bounds = array<i64: 1, 384>}, {transform_indices = @transform_3, window_bounds = array<i64: 32, 384>}]} {
    %c0 = arith.constant 0 : index
    %c0_0 = arith.constant 0 : index
    %0 = vector.load %arg1[%c0, %c0_0] : memref<32x128xf32, #tpu.memory_space<vmem>>, vector<32x128xf32>
    %c0_1 = arith.constant 0 : index
    %c0_2 = arith.constant 0 : index
    %1 = vector.load %arg2[%c0_1, %c0_2] : memref<128x384xf32, #tpu.memory_space<vmem>>, vector<128x384xf32>
    %cst = arith.constant dense<0.000000e+00> : vector<32x384xf32>
    %2 = tpu.matmul %0, %1, %cst {dimension_numbers = #tpu.dot_dimension_numbers<[1], [0], [0], [1], [0, 0, 1, 1], [], []>, precision = #tpu.contract_precision<fp32>} : vector<32x128xf32>, vector<128x384xf32>, vector<32x384xf32> -> vector<32x384xf32>
    %c0_3 = arith.constant 0 : index
    %c0_4 = arith.constant 0 : index
    %3 = vector.load %arg3[%c0_3, %c0_4] : memref<1x384xf32, #tpu.memory_space<vmem>>, vector<1x384xf32>
    %4 = vector.broadcast %3 : vector<1x384xf32> to vector<32x384xf32>
    %5 = arith.addf %2, %4 : vector<32x384xf32>
    %c0_5 = arith.constant 0 : index
    %c0_6 = arith.constant 0 : index
    %6 = vector.load %arg4[%c0_5, %c0_6] : memref<32x384xf32, #tpu.memory_space<vmem>>, vector<32x384xf32>
    tpu.vector_store %arg4[%c0_5, %c0_6], %5 {strides = array<i32>} : memref<32x384xf32, #tpu.memory_space<vmem>>, vector<32x384xf32>,
    return
  }
  func.func @transform_0(%arg0: i32) -> (i32, i32) {
    %c0_i32 = arith.constant 0 : i32
    %c0_i32_0 = arith.constant 0 : i32
    return %arg0, %c0_i32 : i32, i32
  }
  func.func @transform_1(%arg0: i32) -> (i32, i32) {
    %c0_i32 = arith.constant 0 : i32
    %c0_i32_0 = arith.constant 0 : i32
    %c0_i32_1 = arith.constant 0 : i32
    return %c0_i32, %c0_i32_0 : i32, i32
  }
  func.func @transform_2(%arg0: i32) -> (i32, i32) {
    %c0_i32 = arith.constant 0 : i32
    %c0_i32_0 = arith.constant 0 : i32
    %c0_i32_1 = arith.constant 0 : i32
    return %c0_i32, %c0_i32_0 : i32, i32
  }
  func.func @transform_3(%arg0: i32) -> (i32, i32) {
    %c0_i32 = arith.constant 0 : i32
    %c0_i32_0 = arith.constant 0 : i32
    return %arg0, %c0_i32 : i32, i32
  }
}

</mosaic_0001>

<llo_original>
// kernel: tpu_custom_call.1
$region0: #{tpu_custom_call.1}
  #allocation0 [shape = 'u32[]', space=smem, size = 0x4, offset = 0x4, fixed_abs, tag = 'smem constant byte address 0x4 - core index']
  #allocation1 [shape = 'u32[144,128]{1,0:T(1,128)}', space=vmem, size = 0x12000, scoped, tag = 'internal scratch']
  %s0 = inlined_call_operand.hbm [shape: f32[32,128], index: 0, kind: input, shape index: {}]
  %s1 = inlined_call_operand.hbm [shape: f32[128,384], index: 1, kind: input, shape index: {}]
  %s2 = inlined_call_operand.vmem [shape: f32[1,384], index: 2, kind: input, shape index: {}]
  %s3 = inlined_call_operand.hbm [shape: f32[32,384], index: 3, kind: output, shape index: {}]
  %s4 = sld [smem:[#allocation0]]
  $region30: #{tpu_custom_call.1} parent=0
    _
  %s6 = ssub.s32 1, %s4
  %s7 = scalar_select 0, %s6, %s4
  $region1: #{tpu_custom_call.1} parent=0
    #allocation2 [shape = 'u8[16384]{0}', space=vmem, size = 0x4000, scoped, tag = 'input window, operand 0, single buffered']
    #allocation3 [shape = 's32[1]{0}', space=sflag, size = 0x4, scoped, tag = 'scoped memory for tpu_custom_call.1']
    #allocation4 [shape = 's32[1]{0}', space=sflag, size = 0x4, scoped, tag = 'scoped memory for tpu_custom_call.1']
    #allocation5 [shape = 'u8[196608]{0}', space=vmem, size = 0x30000, scoped, tag = 'input window, operand 1, single buffered']
    #allocation6 [shape = 's32[1]{0}', space=sflag, size = 0x4, scoped, tag = 'scoped memory for tpu_custom_call.1']
    #allocation7 [shape = 'u8[49152]{0}', space=vmem, size = 0xc000, scoped, tag = 'output window, operand 0, single buffered']
    %8 = vsyncpa [#allocation3], 0
    %9 = vsyncpa [#allocation6], 0
    %10 = vsyncpa [#allocation4], 0
    // Predicated region
    $region2: #{tpu_custom_call.1} parent=1 // pred_check
      _
    $region3: #{tpu_custom_call.1} parent=1 // pred_check_branch
      %12 = sbr.rel (0) target = $region5
    $region4: #{tpu_custom_call.1} parent=1 // pred_region
      %s14 = ssub.s32 512, 512
      %15 = vsyncadd [#allocation3], %s14
      %s16 = sshll.u32 [#allocation2], 4
      %s17 = int_to_ptr.vmem [resolvable:$true] %s16
      %22 = dma.hbm_to_vmem [thread:$0]  %s0, 512, %s17, [#allocation3], 128, 128, 8
    $region5: #{tpu_custom_call.1} parent=1 // pred_fallthru
      _
    // Predicated region
    $region6: #{tpu_custom_call.1} parent=1 // pred_check
      _
    $region7: #{tpu_custom_call.1} parent=1 // pred_check_branch
      %24 = sbr.rel (0) target = $region9
    $region8: #{tpu_custom_call.1} parent=1 // pred_region
      %s26 = ssub.s32 6144, 6144
      %27 = vsyncadd [#allocation6], %s26
      %s28 = sshll.u32 [#allocation5], 4
      %s29 = int_to_ptr.vmem [resolvable:$true] %s28
      %34 = dma.hbm_to_vmem [thread:$0]  %s1, 6144, %s29, [#allocation6], 384, 384, 24
    $region9: #{tpu_custom_call.1} parent=1 // pred_fallthru
      _
    // Predicated region
    $region10: #{tpu_custom_call.1} parent=1 // pred_check
      _
    $region11: #{tpu_custom_call.1} parent=1 // pred_check_branch
      %36 = sbr.rel (0) target = $region13
    $region12: #{tpu_custom_call.1} parent=1 // pred_region
      _
    $region13: #{tpu_custom_call.1} parent=1 // pred_fallthru
      _
    // Predicated region
    $region14: #{tpu_custom_call.1} parent=1 // pred_check
      _
    $region15: #{tpu_custom_call.1} parent=1 // pred_check_branch
      %38 = sbr.rel (0) target = $region17
    $region16: #{tpu_custom_call.1} parent=1 // pred_region
      %39 = dma.done [#allocation3], 512
    $region17: #{tpu_custom_call.1} parent=1 // pred_fallthru
      _
    // Predicated region
    $region18: #{tpu_custom_call.1} parent=1 // pred_check
      _
    $region19: #{tpu_custom_call.1} parent=1 // pred_check_branch
      %41 = sbr.rel (0) target = $region21
    $region20: #{tpu_custom_call.1} parent=1 // pred_region
      %42 = dma.done [#allocation6], 6144
    $region21: #{tpu_custom_call.1} parent=1 // pred_fallthru
      _
    %v43 = vld [vmem:[#allocation2] sm:$0xff]
    %v44 = vld [vmem:[#allocation2 + $0x8] sm:$0xff]
    %v45 = vld [vmem:[#allocation2 + $0x10] sm:$0xff]
    %v46 = vld [vmem:[#allocation2 + $0x18] sm:$0xff]
    %v47 = vld [vmem:[#allocation5] sm:$0xff]
    %v48 = vld [vmem:[#allocation5 + $0x8] sm:$0xff]
    %v49 = vld [vmem:[#allocation5 + $0x10] sm:$0xff]
    %v50 = vld [vmem:[#allocation5 + $0x18] sm:$0xff]
    %v51 = vld [vmem:[#allocation5 + $0x20] sm:$0xff]
    %v52 = vld [vmem:[#allocation5 + $0x28] sm:$0xff]
    %v53 = vld [vmem:[#allocation5 + $0x30] sm:$0xff]
    %v54 = vld [vmem:[#allocation5 + $0x38] sm:$0xff]
    %v55 = vld [vmem:[#allocation5 + $0x40] sm:$0xff]
    %v56 = vld [vmem:[#allocation5 + $0x48] sm:$0xff]
    %v57 = vld [vmem:[#allocation5 + $0x50] sm:$0xff]
    %v58 = vld [vmem:[#allocation5 + $0x58] sm:$0xff]
    %v59 = vld [vmem:[#allocation5 + $0x60] sm:$0xff]
    %v60 = vld [vmem:[#allocation5 + $0x68] sm:$0xff]
    %v61 = vld [vmem:[#allocation5 + $0x70] sm:$0xff]
    %v62 = vld [vmem:[#allocation5 + $0x78] sm:$0xff]
    %v63 = vld [vmem:[#allocation5 + $0x80] sm:$0xff]
    %v64 = vld [vmem:[#allocation5 + $0x88] sm:$0xff]
    %v65 = vld [vmem:[#allocation5 + $0x90] sm:$0xff]
    %v66 = vld [vmem:[#allocation5 + $0x98] sm:$0xff]
    %v67 = vld [vmem:[#allocation5 + $0xa0] sm:$0xff]
    %v68 = vld [vmem:[#allocation5 + $0xa8] sm:$0xff]
    %v69 = vld [vmem:[#allocation5 + $0xb0] sm:$0xff]
    %v70 = vld [vmem:[#allocation5 + $0xb8] sm:$0xff]
    %v71 = vld [vmem:[#allocation5 + $0xc0] sm:$0xff]
    %v72 = vld [vmem:[#allocation5 + $0xc8] sm:$0xff]
    %v73 = vld [vmem:[#allocation5 + $0xd0] sm:$0xff]
    %v74 = vld [vmem:[#allocation5 + $0xd8] sm:$0xff]
    %v75 = vld [vmem:[#allocation5 + $0xe0] sm:$0xff]
    %v76 = vld [vmem:[#allocation5 + $0xe8] sm:$0xff]
    %v77 = vld [vmem:[#allocation5 + $0xf0] sm:$0xff]
    %v78 = vld [vmem:[#allocation5 + $0xf8] sm:$0xff]
    %v79 = vld [vmem:[#allocation5 + $0x100] sm:$0xff]
    %v80 = vld [vmem:[#allocation5 + $0x108] sm:$0xff]
    %v81 = vld [vmem:[#allocation5 + $0x110] sm:$0xff]
    %v82 = vld [vmem:[#allocation5 + $0x118] sm:$0xff]
    %v83 = vld [vmem:[#allocation5 + $0x120] sm:$0xff]
    %v84 = vld [vmem:[#allocation5 + $0x128] sm:$0xff]
    %v85 = vld [vmem:[#allocation5 + $0x130] sm:$0xff]
    %v86 = vld [vmem:[#allocation5 + $0x138] sm:$0xff]
    %v87 = vld [vmem:[#allocation5 + $0x140] sm:$0xff]
    %v88 = vld [vmem:[#allocation5 + $0x148] sm:$0xff]
    %v89 = vld [vmem:[#allocation5 + $0x150] sm:$0xff]
    %v90 = vld [vmem:[#allocation5 + $0x158] sm:$0xff]
    %v91 = vld [vmem:[#allocation5 + $0x160] sm:$0xff]
    %v92 = vld [vmem:[#allocation5 + $0x168] sm:$0xff]
    %v93 = vld [vmem:[#allocation5 + $0x170] sm:$0xff]
    %v94 = vld [vmem:[#allocation5 + $0x178] sm:$0xff]
    %v95 = vld [vmem:[%s2] sm:$0x7]
    %v97 = vlaneseq
    %v98 = vshrl.u32 %v97, 7
    %v99 = vsub.s32 0, %v98
    %v100 = vrot.slane %v95, %v99
    %v101 = vlaneseq
    %v102 = vshrl.u32 %v101, 7
    %v103 = vsub.s32 1, %v102
    %v104 = vrot.slane %v95, %v103
    %v105 = vlaneseq
    %v106 = vshrl.u32 %v105, 7
    %v107 = vsub.s32 2, %v106
    %v108 = vrot.slane %v95, %v107
    %v112 = vand.u32 %v93, 4294901760
    %113 = vmatprep.subr.mxu0 %v112
    %v114 = vand.u32 %v92, 4294901760
    %115 = vmatpush1.msra.mxu0 %v114
    %v116 = vand.u32 %v90, 4294901760
    %117 = vmatprep.subr.mxu0 %v116
    %v118 = vand.u32 %v89, 4294901760
    %119 = vmatpush1.msra.mxu0 %v118
    %v120 = vand.u32 %v87, 4294901760
    %121 = vmatprep.subr.mxu0 %v120
    %v122 = vand.u32 %v86, 4294901760
    %123 = vmatpush1.msra.mxu0 %v122
    %v124 = vand.u32 %v84, 4294901760
    %125 = vmatprep.subr.mxu0 %v124
    %v126 = vand.u32 %v83, 4294901760
    %127 = vmatpush1.msra.mxu0 %v126
    %v128 = vand.u32 %v81, 4294901760
    %129 = vmatprep.subr.mxu0 %v128
    %v130 = vand.u32 %v80, 4294901760
    %131 = vmatpush1.msra.mxu0 %v130
    %v132 = vand.u32 %v78, 4294901760
    %133 = vmatprep.subr.mxu0 %v132
    %v134 = vand.u32 %v77, 4294901760
    %135 = vmatpush1.msra.mxu0 %v134
    %v136 = vand.u32 %v75, 4294901760
    %137 = vmatprep.subr.mxu0 %v136
    %v138 = vand.u32 %v74, 4294901760
    %139 = vmatpush1.msra.mxu0 %v138
    %v140 = vand.u32 %v72, 4294901760
    %141 = vmatprep.subr.mxu0 %v140
    %v142 = vand.u32 %v71, 4294901760
    %143 = vmatpush1.msra.mxu0 %v142
    %v144 = vand.u32 %v69, 4294901760
    %145 = vmatprep.subr.mxu0 %v144
    %v146 = vand.u32 %v68, 4294901760
    %147 = vmatpush1.msra.mxu0 %v146
    %v148 = vand.u32 %v66, 4294901760
    %149 = vmatprep.subr.mxu0 %v148
    %v150 = vand.u32 %v65, 4294901760
    %151 = vmatpush1.msra.mxu0 %v150
    %v152 = vand.u32 %v63, 4294901760
    %153 = vmatprep.subr.mxu0 %v152
    %v154 = vand.u32 %v62, 4294901760
    %155 = vmatpush1.msra.mxu0 %v154
    %v156 = vand.u32 %v60, 4294901760
    %157 = vmatprep.subr.mxu0 %v156
    %v158 = vand.u32 %v59, 4294901760
    %159 = vmatpush1.msra.mxu0 %v158
    %v160 = vand.u32 %v57, 4294901760
    %161 = vmatprep.subr.mxu0 %v160
    %v162 = vand.u32 %v56, 4294901760
    %163 = vmatpush1.msra.mxu0 %v162
    %v164 = vand.u32 %v54, 4294901760
    %165 = vmatprep.subr.mxu0 %v164
    %v166 = vand.u32 %v53, 4294901760
    %167 = vmatpush1.msra.mxu0 %v166
    %v168 = vand.u32 %v51, 4294901760
    %169 = vmatprep.subr.mxu0 %v168
    %v170 = vand.u32 %v50, 4294901760
    %171 = vmatpush1.msra.mxu0 %v170
    %v172 = vand.u32 %v48, 4294901760
    %173 = vmatprep.subr.mxu0 %v172
    %v174 = vand.u32 %v47, 4294901760
    %175 = vmatpush1.msra.mxu0 %v174
    %176 = vmatprep.subr.mxu0 0.0
    %177 = vmatpush2.msra.mxu0 0.0
    %178 = vmatprep.subr.mxu0 0.0
    %179 = vmatpush2.msra.mxu0 0.0
    %180 = vmatprep.subr.mxu0 0.0
    %181 = vmatpush2.msra.mxu0 0.0
    %182 = vmatprep.subr.mxu0 0.0
    %183 = vmatpush2.msra.mxu0 0.0
    %184 = vmatprep.subr.mxu0 0.0
    %185 = vmatpush2.msra.mxu0 0.0
    %186 = vmatprep.subr.mxu0 0.0
    %187 = vmatpush2.msra.mxu0 0.0
    %188 = vmatprep.subr.mxu0 0.0
    %189 = vmatpush2.msra.mxu0 0.0
    %190 = vmatprep.subr.mxu0 0.0
    %191 = vmatpush2.msra.mxu0 0.0
    %192 = vmatprep.subr.mxu0 0.0
    %193 = vmatpush2.msra.mxu0 0.0
    %194 = vmatprep.subr.mxu0 0.0
    %195 = vmatpush2.msra.mxu0 0.0
    %196 = vmatprep.subr.mxu0 0.0
    %197 = vmatpush2.msra.mxu0 0.0
    %198 = vmatprep.subr.mxu0 0.0
    %199 = vmatpush2.msra.mxu0 0.0
    %200 = vmatprep.subr.mxu0 0.0
    %201 = vmatpush2.msra.mxu0 0.0
    %202 = vmatprep.subr.mxu0 0.0
    %203 = vmatpush2.msra.mxu0 0.0
    %204 = vmatprep.subr.mxu0 0.0
    %205 = vmatpush2.msra.mxu0 0.0
    %206 = vmatprep.subr.mxu0 0.0
    %207 = vmatpush2.msra.mxu0 0.0
    %208 = vmatprep.mubr.f32.mxu0 0.0
    %v209 = vand.u32 %v43, 4294901760
    %v210 = vsub.f32 %v43, %v209
    %v211 = vand.u32 %v210, 4294901760
    %v212 = vsub.f32 %v210, %v211
    %v213 = vand.u32 %v212, 4294901760
    %214 = vmatmul.mubr.f32.gmra.mxu0 %v213
    %v215 = vpop.f32.mrf.mxu0
    %v216 = vadd.f32 %v100, %v215
    %v217 = vpop.f32.mrf.mxu0
    %v218 = vadd.f32 %v104, %v217
    %219 = vmatprep.mubr.f32.mxu0 0.0
    %v220 = vand.u32 %v44, 4294901760
    %v221 = vsub.f32 %v44, %v220
    %v222 = vand.u32 %v221, 4294901760
    %v223 = vsub.f32 %v221, %v222
    %v224 = vand.u32 %v223, 4294901760
    %225 = vmatmul.mubr.f32.gmra.mxu0 %v224
    %v226 = vpop.f32.mrf.mxu0
    %v227 = vadd.f32 %v100, %v226
    %v228 = vpop.f32.mrf.mxu0
    %v229 = vadd.f32 %v104, %v228
    %230 = vmatprep.mubr.f32.mxu0 0.0
    %v231 = vand.u32 %v45, 4294901760
    %v232 = vsub.f32 %v45, %v231
    %v233 = vand.u32 %v232, 4294901760
    %v234 = vsub.f32 %v232, %v233
    %v235 = vand.u32 %v234, 4294901760
    %236 = vmatmul.mubr.f32.gmra.mxu0 %v235
    %v237 = vpop.f32.mrf.mxu0
    %v238 = vadd.f32 %v100, %v237
    %v239 = vpop.f32.mrf.mxu0
    %v240 = vadd.f32 %v104, %v239
    %241 = vmatprep.mubr.f32.mxu0 0.0
    %v242 = vand.u32 %v46, 4294901760
    %v243 = vsub.f32 %v46, %v242
    %v244 = vand.u32 %v243, 4294901760
    %v245 = vsub.f32 %v243, %v244
    %v246 = vand.u32 %v245, 4294901760
    %247 = vmatmul.mubr.f32.gmra.mxu0 %v246
    %v248 = vpop.f32.mrf.mxu0
    %v249 = vadd.f32 %v100, %v248
    %v250 = vpop.f32.mrf.mxu0
    %v251 = vadd.f32 %v104, %v250
    %252 = vdwg.mxu0
    %v253 = vand.u32 %v93, 4294901760
    %v254 = vsub.f32 %v93, %v253
    %v255 = vand.u32 %v254, 4294901760
    %v256 = vsub.f32 %v254, %v255
    %v257 = vand.u32 %v256, 4294901760
    %258 = vmatprep.subr.mxu0 %v257
    %v259 = vand.u32 %v92, 4294901760
    %v260 = vsub.f32 %v92, %v259
    %v261 = vand.u32 %v260, 4294901760
    %v262 = vsub.f32 %v260, %v261
    %v263 = vand.u32 %v262, 4294901760
    %264 = vmatpush1.msra.mxu0 %v263
    %v265 = vand.u32 %v90, 4294901760
    %v266 = vsub.f32 %v90, %v265
    %v267 = vand.u32 %v266, 4294901760
    %v268 = vsub.f32 %v266, %v267
    %v269 = vand.u32 %v268, 4294901760
    %270 = vmatprep.subr.mxu0 %v269
    %v271 = vand.u32 %v89, 4294901760
    %v272 = vsub.f32 %v89, %v271
    %v273 = vand.u32 %v272, 4294901760
    %v274 = vsub.f32 %v272, %v273
    %v275 = vand.u32 %v274, 4294901760
    %276 = vmatpush1.msra.mxu0 %v275
    %v277 = vand.u32 %v87, 4294901760
    %v278 = vsub.f32 %v87, %v277
    %v279 = vand.u32 %v278, 4294901760
    %v280 = vsub.f32 %v278, %v279
    %v281 = vand.u32 %v280, 4294901760
    %282 = vmatprep.subr.mxu0 %v281
    %v283 = vand.u32 %v86, 4294901760
    %v284 = vsub.f32 %v86, %v283
    %v285 = vand.u32 %v284, 4294901760
    %v286 = vsub.f32 %v284, %v285
    %v287 = vand.u32 %v286, 4294901760
    %288 = vmatpush1.msra.mxu0 %v287
    %v289 = vand.u32 %v84, 4294901760
    %v290 = vsub.f32 %v84, %v289
    %v291 = vand.u32 %v290, 4294901760
    %v292 = vsub.f32 %v290, %v291
    %v293 = vand.u32 %v292, 4294901760
    %294 = vmatprep.subr.mxu0 %v293
    %v295 = vand.u32 %v83, 4294901760
    %v296 = vsub.f32 %v83, %v295
    %v297 = vand.u32 %v296, 4294901760
    %v298 = vsub.f32 %v296, %v297
    %v299 = vand.u32 %v298, 4294901760
    %300 = vmatpush1.msra.mxu0 %v299
    %v301 = vand.u32 %v81, 4294901760
    %v302 = vsub.f32 %v81, %v301
    %v303 = vand.u32 %v302, 4294901760
    %v304 = vsub.f32 %v302, %v303
    %v305 = vand.u32 %v304, 4294901760
    %306 = vmatprep.subr.mxu0 %v305
    %v307 = vand.u32 %v80, 4294901760
    %v308 = vsub.f32 %v80, %v307
    %v309 = vand.u32 %v308, 4294901760
    %v310 = vsub.f32 %v308, %v309
    %v311 = vand.u32 %v310, 4294901760
    %312 = vmatpush1.msra.mxu0 %v311
    %v313 = vand.u32 %v78, 4294901760
    %v314 = vsub.f32 %v78, %v313
    %v315 = vand.u32 %v314, 4294901760
    %v316 = vsub.f32 %v314, %v315
    %v317 = vand.u32 %v316, 4294901760
    %318 = vmatprep.subr.mxu0 %v317
    %v319 = vand.u32 %v77, 4294901760
    %v320 = vsub.f32 %v77, %v319
    %v321 = vand.u32 %v320, 4294901760
    %v322 = vsub.f32 %v320, %v321
    %v323 = vand.u32 %v322, 4294901760
    %324 = vmatpush1.msra.mxu0 %v323
    %v325 = vand.u32 %v75, 4294901760
    %v326 = vsub.f32 %v75, %v325
    %v327 = vand.u32 %v326, 4294901760
    %v328 = vsub.f32 %v326, %v327
    %v329 = vand.u32 %v328, 4294901760
    %330 = vmatprep.subr.mxu0 %v329
    %v331 = vand.u32 %v74, 4294901760
    %v332 = vsub.f32 %v74, %v331
    %v333 = vand.u32 %v332, 4294901760
    %v334 = vsub.f32 %v332, %v333
    %v335 = vand.u32 %v334, 4294901760
    %336 = vmatpush1.msra.mxu0 %v335
    %v337 = vand.u32 %v72, 4294901760
    %v338 = vsub.f32 %v72, %v337
    %v339 = vand.u32 %v338, 4294901760
    %v340 = vsub.f32 %v338, %v339
    %v341 = vand.u32 %v340, 4294901760
    %342 = vmatprep.subr.mxu0 %v341
    %v343 = vand.u32 %v71, 4294901760
    %v344 = vsub.f32 %v71, %v343
    %v345 = vand.u32 %v344, 4294901760
    %v346 = vsub.f32 %v344, %v345
    %v347 = vand.u32 %v346, 4294901760
    %348 = vmatpush1.msra.mxu0 %v347
    %v349 = vand.u32 %v69, 4294901760
    %v350 = vsub.f32 %v69, %v349
    %v351 = vand.u32 %v350, 4294901760
    %v352 = vsub.f32 %v350, %v351
    %v353 = vand.u32 %v352, 4294901760
    %354 = vmatprep.subr.mxu0 %v353
    %v355 = vand.u32 %v68, 4294901760
    %v356 = vsub.f32 %v68, %v355
    %v357 = vand.u32 %v356, 4294901760
    %v358 = vsub.f32 %v356, %v357
    %v359 = vand.u32 %v358, 4294901760
    %360 = vmatpush1.msra.mxu0 %v359
    %v361 = vand.u32 %v66, 4294901760
    %v362 = vsub.f32 %v66, %v361
    %v363 = vand.u32 %v362, 4294901760
    %v364 = vsub.f32 %v362, %v363
    %v365 = vand.u32 %v364, 4294901760
    %366 = vmatprep.subr.mxu0 %v365
    %v367 = vand.u32 %v65, 4294901760
    %v368 = vsub.f32 %v65, %v367
    %v369 = vand.u32 %v368, 4294901760
    %v370 = vsub.f32 %v368, %v369
    %v371 = vand.u32 %v370, 4294901760
    %372 = vmatpush1.msra.mxu0 %v371
    %v373 = vand.u32 %v63, 4294901760
    %v374 = vsub.f32 %v63, %v373
    %v375 = vand.u32 %v374, 4294901760
    %v376 = vsub.f32 %v374, %v375
    %v377 = vand.u32 %v376, 4294901760
    %378 = vmatprep.subr.mxu0 %v377
    %v379 = vand.u32 %v62, 4294901760
    %v380 = vsub.f32 %v62, %v379
    %v381 = vand.u32 %v380, 4294901760
    %v382 = vsub.f32 %v380, %v381
    %v383 = vand.u32 %v382, 4294901760
    %384 = vmatpush1.msra.mxu0 %v383
    %v385 = vand.u32 %v60, 4294901760
    %v386 = vsub.f32 %v60, %v385
    %v387 = vand.u32 %v386, 4294901760
    %v388 = vsub.f32 %v386, %v387
    %v389 = vand.u32 %v388, 4294901760
    %390 = vmatprep.subr.mxu0 %v389
    %v391 = vand.u32 %v59, 4294901760
    %v392 = vsub.f32 %v59, %v391
    %v393 = vand.u32 %v392, 4294901760
    %v394 = vsub.f32 %v392, %v393
    %v395 = vand.u32 %v394, 4294901760
    %396 = vmatpush1.msra.mxu0 %v395
    %v397 = vand.u32 %v57, 4294901760
    %v398 = vsub.f32 %v57, %v397
    %v399 = vand.u32 %v398, 4294901760
    %v400 = vsub.f32 %v398, %v399
    %v401 = vand.u32 %v400, 4294901760
    %402 = vmatprep.subr.mxu0 %v401
    %v403 = vand.u32 %v56, 4294901760
    %v404 = vsub.f32 %v56, %v403
    %v405 = vand.u32 %v404, 4294901760
    %v406 = vsub.f32 %v404, %v405
    %v407 = vand.u32 %v406, 4294901760
    %408 = vmatpush1.msra.mxu0 %v407
    %v409 = vand.u32 %v54, 4294901760
    %v410 = vsub.f32 %v54, %v409
    %v411 = vand.u32 %v410, 4294901760
    %v412 = vsub.f32 %v410, %v411
    %v413 = vand.u32 %v412, 4294901760
    %414 = vmatprep.subr.mxu0 %v413
    %v415 = vand.u32 %v53, 4294901760
    %v416 = vsub.f32 %v53, %v415
    %v417 = vand.u32 %v416, 4294901760
    %v418 = vsub.f32 %v416, %v417
    %v419 = vand.u32 %v418, 4294901760
    %420 = vmatpush1.msra.mxu0 %v419
    %v421 = vand.u32 %v51, 4294901760
    %v422 = vsub.f32 %v51, %v421
    %v423 = vand.u32 %v422, 4294901760
    %v424 = vsub.f32 %v422, %v423
    %v425 = vand.u32 %v424, 4294901760
    %426 = vmatprep.subr.mxu0 %v425
    %v427 = vand.u32 %v50, 4294901760
    %v428 = vsub.f32 %v50, %v427
    %v429 = vand.u32 %v428, 4294901760
    %v430 = vsub.f32 %v428, %v429
    %v431 = vand.u32 %v430, 4294901760
    %432 = vmatpush1.msra.mxu0 %v431
    %v433 = vand.u32 %v48, 4294901760
    %v434 = vsub.f32 %v48, %v433
    %v435 = vand.u32 %v434, 4294901760
    %v436 = vsub.f32 %v434, %v435
    %v437 = vand.u32 %v436, 4294901760
    %438 = vmatprep.subr.mxu0 %v437
    %v439 = vand.u32 %v47, 4294901760
    %v440 = vsub.f32 %v47, %v439
    %v441 = vand.u32 %v440, 4294901760
    %v442 = vsub.f32 %v440, %v441
    %v443 = vand.u32 %v442, 4294901760
    %444 = vmatpush1.msra.mxu0 %v443
    %445 = vmatprep.subr.mxu0 0.0
    %446 = vmatpush2.msra.mxu0 0.0
    %447 = vmatprep.subr.mxu0 0.0
    %448 = vmatpush2.msra.mxu0 0.0
    %449 = vmatprep.subr.mxu0 0.0
    %450 = vmatpush2.msra.mxu0 0.0
    %451 = vmatprep.subr.mxu0 0.0
    %452 = vmatpush2.msra.mxu0 0.0
    %453 = vmatprep.subr.mxu0 0.0
    %454 = vmatpush2.msra.mxu0 0.0
    %455 = vmatprep.subr.mxu0 0.0
    %456 = vmatpush2.msra.mxu0 0.0
    %457 = vmatprep.subr.mxu0 0.0
    %458 = vmatpush2.msra.mxu0 0.0
    %459 = vmatprep.subr.mxu0 0.0
    %460 = vmatpush2.msra.mxu0 0.0
    %461 = vmatprep.subr.mxu0 0.0
    %462 = vmatpush2.msra.mxu0 0.0
    %463 = vmatprep.subr.mxu0 0.0
    %464 = vmatpush2.msra.mxu0 0.0
    %465 = vmatprep.subr.mxu0 0.0
    %466 = vmatpush2.msra.mxu0 0.0
    %467 = vmatprep.subr.mxu0 0.0
    %468 = vmatpush2.msra.mxu0 0.0
    %469 = vmatprep.subr.mxu0 0.0
    %470 = vmatpush2.msra.mxu0 0.0
    %471 = vmatprep.subr.mxu0 0.0
    %472 = vmatpush2.msra.mxu0 0.0
    %473 = vmatprep.subr.mxu0 0.0
    %474 = vmatpush2.msra.mxu0 0.0
    %475 = vmatprep.subr.mxu0 0.0
    %476 = vmatpush2.msra.mxu0 0.0
    %477 = vmatprep.mubr.f32.mxu0 0.0
    %v478 = vand.u32 %v43, 4294901760
    %479 = vmatmul.mubr.f32.gmra.mxu0 %v478
    %v480 = vpop.f32.mrf.mxu0
    %v481 = vadd.f32 %v216, %v480
    %v482 = vpop.f32.mrf.mxu0
    %v483 = vadd.f32 %v218, %v482
    %484 = vmatprep.mubr.f32.mxu0 0.0
    %v485 = vand.u32 %v44, 4294901760
    %486 = vmatmul.mubr.f32.gmra.mxu0 %v485
    %v487 = vpop.f32.mrf.mxu0
    %v488 = vadd.f32 %v227, %v487
    %v489 = vpop.f32.mrf.mxu0
    %v490 = vadd.f32 %v229, %v489
    %491 = vmatprep.mubr.f32.mxu0 0.0
    %v492 = vand.u32 %v45, 4294901760
    %493 = vmatmul.mubr.f32.gmra.mxu0 %v492
    %v494 = vpop.f32.mrf.mxu0
    %v495 = vadd.f32 %v238, %v494
    %v496 = vpop.f32.mrf.mxu0
    %v497 = vadd.f32 %v240, %v496
    %498 = vmatprep.mubr.f32.mxu0 0.0
    %v499 = vand.u32 %v46, 4294901760
    %500 = vmatmul.mubr.f32.gmra.mxu0 %v499
    %v501 = vpop.f32.mrf.mxu0
    %v502 = vadd.f32 %v249, %v501
    %v503 = vpop.f32.mrf.mxu0
    %v504 = vadd.f32 %v251, %v503
    %505 = vdwg.mxu0
    %v506 = vand.u32 %v93, 4294901760
    %v507 = vsub.f32 %v93, %v506
    %508 = vmatprep.subr.mxu0 %v507
    %v509 = vand.u32 %v92, 4294901760
    %v510 = vsub.f32 %v92, %v509
    %511 = vmatpush1.msra.mxu0 %v510
    %v512 = vand.u32 %v90, 4294901760
    %v513 = vsub.f32 %v90, %v512
    %514 = vmatprep.subr.mxu0 %v513
    %v515 = vand.u32 %v89, 4294901760
    %v516 = vsub.f32 %v89, %v515
    %517 = vmatpush1.msra.mxu0 %v516
    %v518 = vand.u32 %v87, 4294901760
    %v519 = vsub.f32 %v87, %v518
    %520 = vmatprep.subr.mxu0 %v519
    %v521 = vand.u32 %v86, 4294901760
    %v522 = vsub.f32 %v86, %v521
    %523 = vmatpush1.msra.mxu0 %v522
    %v524 = vand.u32 %v84, 4294901760
    %v525 = vsub.f32 %v84, %v524
    %526 = vmatprep.subr.mxu0 %v525
    %v527 = vand.u32 %v83, 4294901760
    %v528 = vsub.f32 %v83, %v527
    %529 = vmatpush1.msra.mxu0 %v528
    %v530 = vand.u32 %v81, 4294901760
    %v531 = vsub.f32 %v81, %v530
    %532 = vmatprep.subr.mxu0 %v531
    %v533 = vand.u32 %v80, 4294901760
    %v534 = vsub.f32 %v80, %v533
    %535 = vmatpush1.msra.mxu0 %v534
    %v536 = vand.u32 %v78, 4294901760
    %v537 = vsub.f32 %v78, %v536
    %538 = vmatprep.subr.mxu0 %v537
    %v539 = vand.u32 %v77, 4294901760
    %v540 = vsub.f32 %v77, %v539
    %541 = vmatpush1.msra.mxu0 %v540
    %v542 = vand.u32 %v75, 4294901760
    %v543 = vsub.f32 %v75, %v542
    %544 = vmatprep.subr.mxu0 %v543
    %v545 = vand.u32 %v74, 4294901760
    %v546 = vsub.f32 %v74, %v545
    %547 = vmatpush1.msra.mxu0 %v546
    %v548 = vand.u32 %v72, 4294901760
    %v549 = vsub.f32 %v72, %v548
    %550 = vmatprep.subr.mxu0 %v549
    %v551 = vand.u32 %v71, 4294901760
    %v552 = vsub.f32 %v71, %v551
    %553 = vmatpush1.msra.mxu0 %v552
    %v554 = vand.u32 %v69, 4294901760
    %v555 = vsub.f32 %v69, %v554
    %556 = vmatprep.subr.mxu0 %v555
    %v557 = vand.u32 %v68, 4294901760
    %v558 = vsub.f32 %v68, %v557
    %559 = vmatpush1.msra.mxu0 %v558
    %v560 = vand.u32 %v66, 4294901760
    %v561 = vsub.f32 %v66, %v560
    %562 = vmatprep.subr.mxu0 %v561
    %v563 = vand.u32 %v65, 4294901760
    %v564 = vsub.f32 %v65, %v563
    %565 = vmatpush1.msra.mxu0 %v564
    %v566 = vand.u32 %v63, 4294901760
    %v567 = vsub.f32 %v63, %v566
    %568 = vmatprep.subr.mxu0 %v567
    %v569 = vand.u32 %v62, 4294901760
    %v570 = vsub.f32 %v62, %v569
    %571 = vmatpush1.msra.mxu0 %v570
    %v572 = vand.u32 %v60, 4294901760
    %v573 = vsub.f32 %v60, %v572
    %574 = vmatprep.subr.mxu0 %v573
    %v575 = vand.u32 %v59, 4294901760
    %v576 = vsub.f32 %v59, %v575
    %577 = vmatpush1.msra.mxu0 %v576
    %v578 = vand.u32 %v57, 4294901760
    %v579 = vsub.f32 %v57, %v578
    %580 = vmatprep.subr.mxu0 %v579
    %v581 = vand.u32 %v56, 4294901760
    %v582 = vsub.f32 %v56, %v581
    %583 = vmatpush1.msra.mxu0 %v582
    %v584 = vand.u32 %v54, 4294901760
    %v585 = vsub.f32 %v54, %v584
    %586 = vmatprep.subr.mxu0 %v585
    %v587 = vand.u32 %v53, 4294901760
    %v588 = vsub.f32 %v53, %v587
    %589 = vmatpush1.msra.mxu0 %v588
    %v590 = vand.u32 %v51, 4294901760
    %v591 = vsub.f32 %v51, %v590
    %592 = vmatprep.subr.mxu0 %v591
    %v593 = vand.u32 %v50, 4294901760
    %v594 = vsub.f32 %v50, %v593
    %595 = vmatpush1.msra.mxu0 %v594
    %v596 = vand.u32 %v48, 4294901760
    %v597 = vsub.f32 %v48, %v596
    %598 = vmatprep.subr.mxu0 %v597
    %v599 = vand.u32 %v47, 4294901760
    %v600 = vsub.f32 %v47, %v599
    %601 = vmatpush1.msra.mxu0 %v600
    %602 = vmatprep.subr.mxu0 0.0
    %603 = vmatpush2.msra.mxu0 0.0
    %604 = vmatprep.subr.mxu0 0.0
    %605 = vmatpush2.msra.mxu0 0.0
    %606 = vmatprep.subr.mxu0 0.0
    %607 = vmatpush2.msra.mxu0 0.0
    %608 = vmatprep.subr.mxu0 0.0
    %609 = vmatpush2.msra.mxu0 0.0
    %610 = vmatprep.subr.mxu0 0.0
    %611 = vmatpush2.msra.mxu0 0.0
    %612 = vmatprep.subr.mxu0 0.0
    %613 = vmatpush2.msra.mxu0 0.0
    %614 = vmatprep.subr.mxu0 0.0
    %615 = vmatpush2.msra.mxu0 0.0
    %616 = vmatprep.subr.mxu0 0.0
    %617 = vmatpush2.msra.mxu0 0.0
    %618 = vmatprep.subr.mxu0 0.0
    %619 = vmatpush2.msra.mxu0 0.0
    %620 = vmatprep.subr.mxu0 0.0
    %621 = vmatpush2.msra.mxu0 0.0
    %622 = vmatprep.subr.mxu0 0.0
    %623 = vmatpush2.msra.mxu0 0.0
    %624 = vmatprep.subr.mxu0 0.0
    %625 = vmatpush2.msra.mxu0 0.0
    %626 = vmatprep.subr.mxu0 0.0
    %627 = vmatpush2.msra.mxu0 0.0
    %628 = vmatprep.subr.mxu0 0.0
    %629 = vmatpush2.msra.mxu0 0.0
    %630 = vmatprep.subr.mxu0 0.0
    %631 = vmatpush2.msra.mxu0 0.0
    %632 = vmatprep.subr.mxu0 0.0
    %633 = vmatpush2.msra.mxu0 0.0
    %634 = vmatprep.mubr.f32.mxu0 0.0
    %v635 = vand.u32 %v43, 4294901760
    %v636 = vsub.f32 %v43, %v635
    %637 = vmatmul.mubr.f32.gmra.mxu0 %v636
    %v638 = vpop.f32.mrf.mxu0
    %v639 = vadd.f32 %v481, %v638
    %v640 = vpop.f32.mrf.mxu0
    %v641 = vadd.f32 %v483, %v640
    %642 = vmatprep.mubr.f32.mxu0 0.0
    %v643 = vand.u32 %v44, 4294901760
    %v644 = vsub.f32 %v44, %v643
    %645 = vmatmul.mubr.f32.gmra.mxu0 %v644
    %v646 = vpop.f32.mrf.mxu0
    %v647 = vadd.f32 %v488, %v646
    %v648 = vpop.f32.mrf.mxu0
    %v649 = vadd.f32 %v490, %v648
    %650 = vmatprep.mubr.f32.mxu0 0.0
    %v651 = vand.u32 %v45, 4294901760
    %v652 = vsub.f32 %v45, %v651
    %653 = vmatmul.mubr.f32.gmra.mxu0 %v652
    %v654 = vpop.f32.mrf.mxu0
    %v655 = vadd.f32 %v495, %v654
    %v656 = vpop.f32.mrf.mxu0
    %v657 = vadd.f32 %v497, %v656
    %658 = vmatprep.mubr.f32.mxu0 0.0
    %v659 = vand.u32 %v46, 4294901760
    %v660 = vsub.f32 %v46, %v659
    %661 = vmatmul.mubr.f32.gmra.mxu0 %v660
    %v662 = vpop.f32.mrf.mxu0
    %v663 = vadd.f32 %v502, %v662
    %v664 = vpop.f32.mrf.mxu0
    %v665 = vadd.f32 %v504, %v664
    %666 = vdwg.mxu0
    %v667 = vand.u32 %v93, 4294901760
    %668 = vmatprep.subr.mxu0 %v667
    %v669 = vand.u32 %v92, 4294901760
    %670 = vmatpush1.msra.mxu0 %v669
    %v671 = vand.u32 %v90, 4294901760
    %672 = vmatprep.subr.mxu0 %v671
    %v673 = vand.u32 %v89, 4294901760
    %674 = vmatpush1.msra.mxu0 %v673
    %v675 = vand.u32 %v87, 4294901760
    %676 = vmatprep.subr.mxu0 %v675
    %v677 = vand.u32 %v86, 4294901760
    %678 = vmatpush1.msra.mxu0 %v677
    %v679 = vand.u32 %v84, 4294901760
    %680 = vmatprep.subr.mxu0 %v679
    %v681 = vand.u32 %v83, 4294901760
    %682 = vmatpush1.msra.mxu0 %v681
    %v683 = vand.u32 %v81, 4294901760
    %684 = vmatprep.subr.mxu0 %v683
    %v685 = vand.u32 %v80, 4294901760
    %686 = vmatpush1.msra.mxu0 %v685
    %v687 = vand.u32 %v78, 4294901760
    %688 = vmatprep.subr.mxu0 %v687
    %v689 = vand.u32 %v77, 4294901760
    %690 = vmatpush1.msra.mxu0 %v689
    %v691 = vand.u32 %v75, 4294901760
    %692 = vmatprep.subr.mxu0 %v691
    %v693 = vand.u32 %v74, 4294901760
    %694 = vmatpush1.msra.mxu0 %v693
    %v695 = vand.u32 %v72, 4294901760
    %696 = vmatprep.subr.mxu0 %v695
    %v697 = vand.u32 %v71, 4294901760
    %698 = vmatpush1.msra.mxu0 %v697
    %v699 = vand.u32 %v69, 4294901760
    %700 = vmatprep.subr.mxu0 %v699
    %v701 = vand.u32 %v68, 4294901760
    %702 = vmatpush1.msra.mxu0 %v701
    %v703 = vand.u32 %v66, 4294901760
    %704 = vmatprep.subr.mxu0 %v703
    %v705 = vand.u32 %v65, 4294901760
    %706 = vmatpush1.msra.mxu0 %v705
    %v707 = vand.u32 %v63, 4294901760
    %708 = vmatprep.subr.mxu0 %v707
    %v709 = vand.u32 %v62, 4294901760
    %710 = vmatpush1.msra.mxu0 %v709
    %v711 = vand.u32 %v60, 4294901760
    %712 = vmatprep.subr.mxu0 %v711
    %v713 = vand.u32 %v59, 4294901760
    %714 = vmatpush1.msra.mxu0 %v713
    %v715 = vand.u32 %v57, 4294901760
    %716 = vmatprep.subr.mxu0 %v715
    %v717 = vand.u32 %v56, 4294901760
    %718 = vmatpush1.msra.mxu0 %v717
    %v719 = vand.u32 %v54, 4294901760
    %720 = vmatprep.subr.mxu0 %v719
    %v721 = vand.u32 %v53, 4294901760
    %722 = vmatpush1.msra.mxu0 %v721
    %v723 = vand.u32 %v51, 4294901760
    %724 = vmatprep.subr.mxu0 %v723
    %v725 = vand.u32 %v50, 4294901760
    %726 = vmatpush1.msra.mxu0 %v725
    %v727 = vand.u32 %v48, 4294901760
    %728 = vmatprep.subr.mxu0 %v727
    %v729 = vand.u32 %v47, 4294901760
    %730 = vmatpush1.msra.mxu0 %v729
    %731 = vmatprep.subr.mxu0 0.0
    %732 = vmatpush2.msra.mxu0 0.0
    %733 = vmatprep.subr.mxu0 0.0
    %734 = vmatpush2.msra.mxu0 0.0
    %735 = vmatprep.subr.mxu0 0.0
    %736 = vmatpush2.msra.mxu0 0.0
    %737 = vmatprep.subr.mxu0 0.0
    %738 = vmatpush2.msra.mxu0 0.0
    %739 = vmatprep.subr.mxu0 0.0
    %740 = vmatpush2.msra.mxu0 0.0
    %741 = vmatprep.subr.mxu0 0.0
    %742 = vmatpush2.msra.mxu0 0.0
    %743 = vmatprep.subr.mxu0 0.0
    %744 = vmatpush2.msra.mxu0 0.0
    %745 = vmatprep.subr.mxu0 0.0
    %746 = vmatpush2.msra.mxu0 0.0
    %747 = vmatprep.subr.mxu0 0.0
    %748 = vmatpush2.msra.mxu0 0.0
    %749 = vmatprep.subr.mxu0 0.0
    %750 = vmatpush2.msra.mxu0 0.0
    %751 = vmatprep.subr.mxu0 0.0
    %752 = vmatpush2.msra.mxu0 0.0
    %753 = vmatprep.subr.mxu0 0.0
    %754 = vmatpush2.msra.mxu0 0.0
    %755 = vmatprep.subr.mxu0 0.0
    %756 = vmatpush2.msra.mxu0 0.0
    %757 = vmatprep.subr.mxu0 0.0
    %758 = vmatpush2.msra.mxu0 0.0
    %759 = vmatprep.subr.mxu0 0.0
    %760 = vmatpush2.msra.mxu0 0.0
    %761 = vmatprep.subr.mxu0 0.0
    %762 = vmatpush2.msra.mxu0 0.0
    %763 = vmatprep.mubr.f32.mxu0 0.0
    %v764 = vand.u32 %v43, 4294901760
    %v765 = vsub.f32 %v43, %v764
    %v766 = vand.u32 %v765, 4294901760
    %767 = vmatmul.mubr.f32.gmra.mxu0 %v766
    %v768 = vpop.f32.mrf.mxu0
    %v769 = vadd.f32 %v639, %v768
    %v770 = vpop.f32.mrf.mxu0
    %v771 = vadd.f32 %v641, %v770
    %772 = vmatprep.mubr.f32.mxu0 0.0
    %v773 = vand.u32 %v44, 4294901760
    %v774 = vsub.f32 %v44, %v773
    %v775 = vand.u32 %v774, 4294901760
    %776 = vmatmul.mubr.f32.gmra.mxu0 %v775
    %v777 = vpop.f32.mrf.mxu0
    %v778 = vadd.f32 %v647, %v777
    %v779 = vpop.f32.mrf.mxu0
    %v780 = vadd.f32 %v649, %v779
    %781 = vmatprep.mubr.f32.mxu0 0.0
    %v782 = vand.u32 %v45, 4294901760
    %v783 = vsub.f32 %v45, %v782
    %v784 = vand.u32 %v783, 4294901760
    %785 = vmatmul.mubr.f32.gmra.mxu0 %v784
    %v786 = vpop.f32.mrf.mxu0
    %v787 = vadd.f32 %v655, %v786
    %v788 = vpop.f32.mrf.mxu0
    %v789 = vadd.f32 %v657, %v788
    %790 = vmatprep.mubr.f32.mxu0 0.0
    %v791 = vand.u32 %v46, 4294901760
    %v792 = vsub.f32 %v46, %v791
    %v793 = vand.u32 %v792, 4294901760
    %794 = vmatmul.mubr.f32.gmra.mxu0 %v793
    %v795 = vpop.f32.mrf.mxu0
    %v796 = vadd.f32 %v663, %v795
    %v797 = vpop.f32.mrf.mxu0
    %v798 = vadd.f32 %v665, %v797
    %799 = vdwg.mxu0
    %v800 = vand.u32 %v93, 4294901760
    %v801 = vsub.f32 %v93, %v800
    %v802 = vand.u32 %v801, 4294901760
    %803 = vmatprep.subr.mxu0 %v802
    %v804 = vand.u32 %v92, 4294901760
    %v805 = vsub.f32 %v92, %v804
    %v806 = vand.u32 %v805, 4294901760
    %807 = vmatpush1.msra.mxu0 %v806
    %v808 = vand.u32 %v90, 4294901760
    %v809 = vsub.f32 %v90, %v808
    %v810 = vand.u32 %v809, 4294901760
    %811 = vmatprep.subr.mxu0 %v810
    %v812 = vand.u32 %v89, 4294901760
    %v813 = vsub.f32 %v89, %v812
    %v814 = vand.u32 %v813, 4294901760
    %815 = vmatpush1.msra.mxu0 %v814
    %v816 = vand.u32 %v87, 4294901760
    %v817 = vsub.f32 %v87, %v816
    %v818 = vand.u32 %v817, 4294901760
    %819 = vmatprep.subr.mxu0 %v818
    %v820 = vand.u32 %v86, 4294901760
    %v821 = vsub.f32 %v86, %v820
    %v822 = vand.u32 %v821, 4294901760
    %823 = vmatpush1.msra.mxu0 %v822
    %v824 = vand.u32 %v84, 4294901760
    %v825 = vsub.f32 %v84, %v824
    %v826 = vand.u32 %v825, 4294901760
    %827 = vmatprep.subr.mxu0 %v826
    %v828 = vand.u32 %v83, 4294901760
    %v829 = vsub.f32 %v83, %v828
    %v830 = vand.u32 %v829, 4294901760
    %831 = vmatpush1.msra.mxu0 %v830
    %v832 = vand.u32 %v81, 4294901760
    %v833 = vsub.f32 %v81, %v832
    %v834 = vand.u32 %v833, 4294901760
    %835 = vmatprep.subr.mxu0 %v834
    %v836 = vand.u32 %v80, 4294901760
    %v837 = vsub.f32 %v80, %v836
    %v838 = vand.u32 %v837, 4294901760
    %839 = vmatpush1.msra.mxu0 %v838
    %v840 = vand.u32 %v78, 4294901760
    %v841 = vsub.f32 %v78, %v840
    %v842 = vand.u32 %v841, 4294901760
    %843 = vmatprep.subr.mxu0 %v842
    %v844 = vand.u32 %v77, 4294901760
    %v845 = vsub.f32 %v77, %v844
    %v846 = vand.u32 %v845, 4294901760
    %847 = vmatpush1.msra.mxu0 %v846
    %v848 = vand.u32 %v75, 4294901760
    %v849 = vsub.f32 %v75, %v848
    %v850 = vand.u32 %v849, 4294901760
    %851 = vmatprep.subr.mxu0 %v850
    %v852 = vand.u32 %v74, 4294901760
    %v853 = vsub.f32 %v74, %v852
    %v854 = vand.u32 %v853, 4294901760
    %855 = vmatpush1.msra.mxu0 %v854
    %v856 = vand.u32 %v72, 4294901760
    %v857 = vsub.f32 %v72, %v856
    %v858 = vand.u32 %v857, 4294901760
    %859 = vmatprep.subr.mxu0 %v858
    %v860 = vand.u32 %v71, 4294901760
    %v861 = vsub.f32 %v71, %v860
    %v862 = vand.u32 %v861, 4294901760
    %863 = vmatpush1.msra.mxu0 %v862
    %v864 = vand.u32 %v69, 4294901760
    %v865 = vsub.f32 %v69, %v864
    %v866 = vand.u32 %v865, 4294901760
    %867 = vmatprep.subr.mxu0 %v866
    %v868 = vand.u32 %v68, 4294901760
    %v869 = vsub.f32 %v68, %v868
    %v870 = vand.u32 %v869, 4294901760
    %871 = vmatpush1.msra.mxu0 %v870
    %v872 = vand.u32 %v66, 4294901760
    %v873 = vsub.f32 %v66, %v872
    %v874 = vand.u32 %v873, 4294901760
    %875 = vmatprep.subr.mxu0 %v874
    %v876 = vand.u32 %v65, 4294901760
    %v877 = vsub.f32 %v65, %v876
    %v878 = vand.u32 %v877, 4294901760
    %879 = vmatpush1.msra.mxu0 %v878
    %v880 = vand.u32 %v63, 4294901760
    %v881 = vsub.f32 %v63, %v880
    %v882 = vand.u32 %v881, 4294901760
    %883 = vmatprep.subr.mxu0 %v882
    %v884 = vand.u32 %v62, 4294901760
    %v885 = vsub.f32 %v62, %v884
    %v886 = vand.u32 %v885, 4294901760
    %887 = vmatpush1.msra.mxu0 %v886
    %v888 = vand.u32 %v60, 4294901760
    %v889 = vsub.f32 %v60, %v888
    %v890 = vand.u32 %v889, 4294901760
    %891 = vmatprep.subr.mxu0 %v890
    %v892 = vand.u32 %v59, 4294901760
    %v893 = vsub.f32 %v59, %v892
    %v894 = vand.u32 %v893, 4294901760
    %895 = vmatpush1.msra.mxu0 %v894
    %v896 = vand.u32 %v57, 4294901760
    %v897 = vsub.f32 %v57, %v896
    %v898 = vand.u32 %v897, 4294901760
    %899 = vmatprep.subr.mxu0 %v898
    %v900 = vand.u32 %v56, 4294901760
    %v901 = vsub.f32 %v56, %v900
    %v902 = vand.u32 %v901, 4294901760
    %903 = vmatpush1.msra.mxu0 %v902
    %v904 = vand.u32 %v54, 4294901760
    %v905 = vsub.f32 %v54, %v904
    %v906 = vand.u32 %v905, 4294901760
    %907 = vmatprep.subr.mxu0 %v906
    %v908 = vand.u32 %v53, 4294901760
    %v909 = vsub.f32 %v53, %v908
    %v910 = vand.u32 %v909, 4294901760
    %911 = vmatpush1.msra.mxu0 %v910
    %v912 = vand.u32 %v51, 4294901760
    %v913 = vsub.f32 %v51, %v912
    %v914 = vand.u32 %v913, 4294901760
    %915 = vmatprep.subr.mxu0 %v914
    %v916 = vand.u32 %v50, 4294901760
    %v917 = vsub.f32 %v50, %v916
    %v918 = vand.u32 %v917, 4294901760
    %919 = vmatpush1.msra.mxu0 %v918
    %v920 = vand.u32 %v48, 4294901760
    %v921 = vsub.f32 %v48, %v920
    %v922 = vand.u32 %v921, 4294901760
    %923 = vmatprep.subr.mxu0 %v922
    %v924 = vand.u32 %v47, 4294901760
    %v925 = vsub.f32 %v47, %v924
    %v926 = vand.u32 %v925, 4294901760
    %927 = vmatpush1.msra.mxu0 %v926
    %928 = vmatprep.subr.mxu0 0.0
    %929 = vmatpush2.msra.mxu0 0.0
    %930 = vmatprep.subr.mxu0 0.0
    %931 = vmatpush2.msra.mxu0 0.0
    %932 = vmatprep.subr.mxu0 0.0
    %933 = vmatpush2.msra.mxu0 0.0
    %934 = vmatprep.subr.mxu0 0.0
    %935 = vmatpush2.msra.mxu0 0.0
    %936 = vmatprep.subr.mxu0 0.0
    %937 = vmatpush2.msra.mxu0 0.0
    %938 = vmatprep.subr.mxu0 0.0
    %939 = vmatpush2.msra.mxu0 0.0
    %940 = vmatprep.subr.mxu0 0.0
    %941 = vmatpush2.msra.mxu0 0.0
    %942 = vmatprep.subr.mxu0 0.0
    %943 = vmatpush2.msra.mxu0 0.0
    %944 = vmatprep.subr.mxu0 0.0
    %945 = vmatpush2.msra.mxu0 0.0
    %946 = vmatprep.subr.mxu0 0.0
    %947 = vmatpush2.msra.mxu0 0.0
    %948 = vmatprep.subr.mxu0 0.0
    %949 = vmatpush2.msra.mxu0 0.0
    %950 = vmatprep.subr.mxu0 0.0
    %951 = vmatpush2.msra.mxu0 0.0
    %952 = vmatprep.subr.mxu0 0.0
    %953 = vmatpush2.msra.mxu0 0.0
    %954 = vmatprep.subr.mxu0 0.0
    %955 = vmatpush2.msra.mxu0 0.0
    %956 = vmatprep.subr.mxu0 0.0
    %957 = vmatpush2.msra.mxu0 0.0
    %958 = vmatprep.subr.mxu0 0.0
    %959 = vmatpush2.msra.mxu0 0.0
    %960 = vmatprep.mubr.f32.mxu0 0.0
    %v961 = vand.u32 %v43, 4294901760
    %962 = vmatmul.mubr.f32.gmra.mxu0 %v961
    %v963 = vpop.f32.mrf.mxu0
    %v964 = vadd.f32 %v769, %v963
    %v965 = vpop.f32.mrf.mxu0
    %v966 = vadd.f32 %v771, %v965
    %967 = vmatprep.mubr.f32.mxu0 0.0
    %v968 = vand.u32 %v44, 4294901760
    %969 = vmatmul.mubr.f32.gmra.mxu0 %v968
    %v970 = vpop.f32.mrf.mxu0
    %v971 = vadd.f32 %v778, %v970
    %v972 = vpop.f32.mrf.mxu0
    %v973 = vadd.f32 %v780, %v972
    %974 = vmatprep.mubr.f32.mxu0 0.0
    %v975 = vand.u32 %v45, 4294901760
    %976 = vmatmul.mubr.f32.gmra.mxu0 %v975
    %v977 = vpop.f32.mrf.mxu0
    %v978 = vadd.f32 %v787, %v977
    %v979 = vpop.f32.mrf.mxu0
    %v980 = vadd.f32 %v789, %v979
    %981 = vmatprep.mubr.f32.mxu0 0.0
    %v982 = vand.u32 %v46, 4294901760
    %983 = vmatmul.mubr.f32.gmra.mxu0 %v982
    %v984 = vpop.f32.mrf.mxu0
    %v985 = vadd.f32 %v796, %v984
    %v986 = vpop.f32.mrf.mxu0
    %v987 = vadd.f32 %v798, %v986
    %988 = vdwg.mxu0
    %v989 = vand.u32 %v93, 4294901760
    %990 = vmatprep.subr.mxu0 %v989
    %v991 = vand.u32 %v92, 4294901760
    %992 = vmatpush1.msra.mxu0 %v991
    %v993 = vand.u32 %v90, 4294901760
    %994 = vmatprep.subr.mxu0 %v993
    %v995 = vand.u32 %v89, 4294901760
    %996 = vmatpush1.msra.mxu0 %v995
    %v997 = vand.u32 %v87, 4294901760
    %998 = vmatprep.subr.mxu0 %v997
    %v999 = vand.u32 %v86, 4294901760
    %1000 = vmatpush1.msra.mxu0 %v999
    %v1001 = vand.u32 %v84, 4294901760
    %1002 = vmatprep.subr.mxu0 %v1001
    %v1003 = vand.u32 %v83, 4294901760
    %1004 = vmatpush1.msra.mxu0 %v1003
    %v1005 = vand.u32 %v81, 4294901760
    %1006 = vmatprep.subr.mxu0 %v1005
    %v1007 = vand.u32 %v80, 4294901760
    %1008 = vmatpush1.msra.mxu0 %v1007
    %v1009 = vand.u32 %v78, 4294901760
    %1010 = vmatprep.subr.mxu0 %v1009
    %v1011 = vand.u32 %v77, 4294901760
    %1012 = vmatpush1.msra.mxu0 %v1011
    %v1013 = vand.u32 %v75, 4294901760
    %1014 = vmatprep.subr.mxu0 %v1013
    %v1015 = vand.u32 %v74, 4294901760
    %1016 = vmatpush1.msra.mxu0 %v1015
    %v1017 = vand.u32 %v72, 4294901760
    %1018 = vmatprep.subr.mxu0 %v1017
    %v1019 = vand.u32 %v71, 4294901760
    %1020 = vmatpush1.msra.mxu0 %v1019
    %v1021 = vand.u32 %v69, 4294901760
    %1022 = vmatprep.subr.mxu0 %v1021
    %v1023 = vand.u32 %v68, 4294901760
    %1024 = vmatpush1.msra.mxu0 %v1023
    %v1025 = vand.u32 %v66, 4294901760
    %1026 = vmatprep.subr.mxu0 %v1025
    %v1027 = vand.u32 %v65, 4294901760
    %1028 = vmatpush1.msra.mxu0 %v1027
    %v1029 = vand.u32 %v63, 4294901760
    %1030 = vmatprep.subr.mxu0 %v1029
    %v1031 = vand.u32 %v62, 4294901760
    %1032 = vmatpush1.msra.mxu0 %v1031
    %v1033 = vand.u32 %v60, 4294901760
    %1034 = vmatprep.subr.mxu0 %v1033
    %v1035 = vand.u32 %v59, 4294901760
    %1036 = vmatpush1.msra.mxu0 %v1035
    %v1037 = vand.u32 %v57, 4294901760
    %1038 = vmatprep.subr.mxu0 %v1037
    %v1039 = vand.u32 %v56, 4294901760
    %1040 = vmatpush1.msra.mxu0 %v1039
    %v1041 = vand.u32 %v54, 4294901760
    %1042 = vmatprep.subr.mxu0 %v1041
    %v1043 = vand.u32 %v53, 4294901760
    %1044 = vmatpush1.msra.mxu0 %v1043
    %v1045 = vand.u32 %v51, 4294901760
    %1046 = vmatprep.subr.mxu0 %v1045
    %v1047 = vand.u32 %v50, 4294901760
    %1048 = vmatpush1.msra.mxu0 %v1047
    %v1049 = vand.u32 %v48, 4294901760
    %1050 = vmatprep.subr.mxu0 %v1049
    %v1051 = vand.u32 %v47, 4294901760
    %1052 = vmatpush1.msra.mxu0 %v1051
    %1053 = vmatprep.subr.mxu0 0.0
    %1054 = vmatpush2.msra.mxu0 0.0
    %1055 = vmatprep.subr.mxu0 0.0
    %1056 = vmatpush2.msra.mxu0 0.0
    %1057 = vmatprep.subr.mxu0 0.0
    %1058 = vmatpush2.msra.mxu0 0.0
    %1059 = vmatprep.subr.mxu0 0.0
    %1060 = vmatpush2.msra.mxu0 0.0
    %1061 = vmatprep.subr.mxu0 0.0
    %1062 = vmatpush2.msra.mxu0 0.0
    %1063 = vmatprep.subr.mxu0 0.0
    %1064 = vmatpush2.msra.mxu0 0.0
    %1065 = vmatprep.subr.mxu0 0.0
    %1066 = vmatpush2.msra.mxu0 0.0
    %1067 = vmatprep.subr.mxu0 0.0
    %1068 = vmatpush2.msra.mxu0 0.0
    %1069 = vmatprep.subr.mxu0 0.0
    %1070 = vmatpush2.msra.mxu0 0.0
    %1071 = vmatprep.subr.mxu0 0.0
    %1072 = vmatpush2.msra.mxu0 0.0
    %1073 = vmatprep.subr.mxu0 0.0
    %1074 = vmatpush2.msra.mxu0 0.0
    %1075 = vmatprep.subr.mxu0 0.0
    %1076 = vmatpush2.msra.mxu0 0.0
    %1077 = vmatprep.subr.mxu0 0.0
    %1078 = vmatpush2.msra.mxu0 0.0
    %1079 = vmatprep.subr.mxu0 0.0
    %1080 = vmatpush2.msra.mxu0 0.0
    %1081 = vmatprep.subr.mxu0 0.0
    %1082 = vmatpush2.msra.mxu0 0.0
    %1083 = vmatprep.subr.mxu0 0.0
    %1084 = vmatpush2.msra.mxu0 0.0
    %1085 = vmatprep.mubr.f32.mxu0 0.0
    %v1086 = vand.u32 %v43, 4294901760
    %1087 = vmatmul.mubr.f32.gmra.mxu0 %v1086
    %v1088 = vpop.f32.mrf.mxu0
    %v1089 = vadd.f32 %v964, %v1088
    %v1090 = vpop.f32.mrf.mxu0
    %v1091 = vadd.f32 %v966, %v1090
    %1092 = vmatprep.mubr.f32.mxu0 0.0
    %v1093 = vand.u32 %v44, 4294901760
    %1094 = vmatmul.mubr.f32.gmra.mxu0 %v1093
    %v1095 = vpop.f32.mrf.mxu0
    %v1096 = vadd.f32 %v971, %v1095
    %v1097 = vpop.f32.mrf.mxu0
    %v1098 = vadd.f32 %v973, %v1097
    %1099 = vmatprep.mubr.f32.mxu0 0.0
    %v1100 = vand.u32 %v45, 4294901760
    %1101 = vmatmul.mubr.f32.gmra.mxu0 %v1100
    %v1102 = vpop.f32.mrf.mxu0
    %v1103 = vadd.f32 %v978, %v1102
    %v1104 = vpop.f32.mrf.mxu0
    %v1105 = vadd.f32 %v980, %v1104
    %1106 = vmatprep.mubr.f32.mxu0 0.0
    %v1107 = vand.u32 %v46, 4294901760
    %1108 = vmatmul.mubr.f32.gmra.mxu0 %v1107
    %v1109 = vpop.f32.mrf.mxu0
    %v1110 = vadd.f32 %v985, %v1109
    %v1111 = vpop.f32.mrf.mxu0
    %v1112 = vadd.f32 %v987, %v1111
    %1113 = vdwg.mxu0
    %1114 = vmatprep.subr.mxu0 0.0
    %v1115 = vand.u32 %v94, 4294901760
    %1116 = vmatpush1.msra.mxu0 %v1115
    %1117 = vmatprep.subr.mxu0 0.0
    %v1118 = vand.u32 %v91, 4294901760
    %1119 = vmatpush1.msra.mxu0 %v1118
    %1120 = vmatprep.subr.mxu0 0.0
    %v1121 = vand.u32 %v88, 4294901760
    %1122 = vmatpush1.msra.mxu0 %v1121
    %1123 = vmatprep.subr.mxu0 0.0
    %v1124 = vand.u32 %v85, 4294901760
    %1125 = vmatpush1.msra.mxu0 %v1124
    %1126 = vmatprep.subr.mxu0 0.0
    %v1127 = vand.u32 %v82, 4294901760
    %1128 = vmatpush1.msra.mxu0 %v1127
    %1129 = vmatprep.subr.mxu0 0.0
    %v1130 = vand.u32 %v79, 4294901760
    %1131 = vmatpush1.msra.mxu0 %v1130
    %1132 = vmatprep.subr.mxu0 0.0
    %v1133 = vand.u32 %v76, 4294901760
    %1134 = vmatpush1.msra.mxu0 %v1133
    %1135 = vmatprep.subr.mxu0 0.0
    %v1136 = vand.u32 %v73, 4294901760
    %1137 = vmatpush1.msra.mxu0 %v1136
    %1138 = vmatprep.subr.mxu0 0.0
    %v1139 = vand.u32 %v70, 4294901760
    %1140 = vmatpush1.msra.mxu0 %v1139
    %1141 = vmatprep.subr.mxu0 0.0
    %v1142 = vand.u32 %v67, 4294901760
    %1143 = vmatpush1.msra.mxu0 %v1142
    %1144 = vmatprep.subr.mxu0 0.0
    %v1145 = vand.u32 %v64, 4294901760
    %1146 = vmatpush1.msra.mxu0 %v1145
    %1147 = vmatprep.subr.mxu0 0.0
    %v1148 = vand.u32 %v61, 4294901760
    %1149 = vmatpush1.msra.mxu0 %v1148
    %1150 = vmatprep.subr.mxu0 0.0
    %v1151 = vand.u32 %v58, 4294901760
    %1152 = vmatpush1.msra.mxu0 %v1151
    %1153 = vmatprep.subr.mxu0 0.0
    %v1154 = vand.u32 %v55, 4294901760
    %1155 = vmatpush1.msra.mxu0 %v1154
    %1156 = vmatprep.subr.mxu0 0.0
    %v1157 = vand.u32 %v52, 4294901760
    %1158 = vmatpush1.msra.mxu0 %v1157
    %1159 = vmatprep.subr.mxu0 0.0
    %v1160 = vand.u32 %v49, 4294901760
    %1161 = vmatpush1.msra.mxu0 %v1160
    %1162 = vmatprep.subr.mxu0 0.0
    %1163 = vmatpush2.msra.mxu0 0.0
    %1164 = vmatprep.subr.mxu0 0.0
    %1165 = vmatpush2.msra.mxu0 0.0
    %1166 = vmatprep.subr.mxu0 0.0
    %1167 = vmatpush2.msra.mxu0 0.0
    %1168 = vmatprep.subr.mxu0 0.0
    %1169 = vmatpush2.msra.mxu0 0.0
    %1170 = vmatprep.subr.mxu0 0.0
    %1171 = vmatpush2.msra.mxu0 0.0
    %1172 = vmatprep.subr.mxu0 0.0
    %1173 = vmatpush2.msra.mxu0 0.0
    %1174 = vmatprep.subr.mxu0 0.0
    %1175 = vmatpush2.msra.mxu0 0.0
    %1176 = vmatprep.subr.mxu0 0.0
    %1177 = vmatpush2.msra.mxu0 0.0
    %1178 = vmatprep.subr.mxu0 0.0
    %1179 = vmatpush2.msra.mxu0 0.0
    %1180 = vmatprep.subr.mxu0 0.0
    %1181 = vmatpush2.msra.mxu0 0.0
    %1182 = vmatprep.subr.mxu0 0.0
    %1183 = vmatpush2.msra.mxu0 0.0
    %1184 = vmatprep.subr.mxu0 0.0
    %1185 = vmatpush2.msra.mxu0 0.0
    %1186 = vmatprep.subr.mxu0 0.0
    %1187 = vmatpush2.msra.mxu0 0.0
    %1188 = vmatprep.subr.mxu0 0.0
    %1189 = vmatpush2.msra.mxu0 0.0
    %1190 = vmatprep.subr.mxu0 0.0
    %1191 = vmatpush2.msra.mxu0 0.0
    %1192 = vmatprep.subr.mxu0 0.0
    %1193 = vmatpush2.msra.mxu0 0.0
    %1194 = vmatprep.mubr.f32.mxu0 0.0
    %v1195 = vand.u32 %v43, 4294901760
    %v1196 = vsub.f32 %v43, %v1195
    %v1197 = vand.u32 %v1196, 4294901760
    %v1198 = vsub.f32 %v1196, %v1197
    %v1199 = vand.u32 %v1198, 4294901760
    %1200 = vmatmul.mubr.f32.gmra.mxu0 %v1199
    %v1201 = vpop.f32.mrf.mxu0
    %v1202 = vadd.f32 %v108, %v1201
    %v1203 = vpop.f32.mrf.mxu0
    %1204 = vmatprep.mubr.f32.mxu0 0.0
    %v1205 = vand.u32 %v44, 4294901760
    %v1206 = vsub.f32 %v44, %v1205
    %v1207 = vand.u32 %v1206, 4294901760
    %v1208 = vsub.f32 %v1206, %v1207
    %v1209 = vand.u32 %v1208, 4294901760
    %1210 = vmatmul.mubr.f32.gmra.mxu0 %v1209
    %v1211 = vpop.f32.mrf.mxu0
    %v1212 = vadd.f32 %v108, %v1211
    %v1213 = vpop.f32.mrf.mxu0
    %1214 = vmatprep.mubr.f32.mxu0 0.0
    %v1215 = vand.u32 %v45, 4294901760
    %v1216 = vsub.f32 %v45, %v1215
    %v1217 = vand.u32 %v1216, 4294901760
    %v1218 = vsub.f32 %v1216, %v1217
    %v1219 = vand.u32 %v1218, 4294901760
    %1220 = vmatmul.mubr.f32.gmra.mxu0 %v1219
    %v1221 = vpop.f32.mrf.mxu0
    %v1222 = vadd.f32 %v108, %v1221
    %v1223 = vpop.f32.mrf.mxu0
    %1224 = vmatprep.mubr.f32.mxu0 0.0
    %v1225 = vand.u32 %v46, 4294901760
    %v1226 = vsub.f32 %v46, %v1225
    %v1227 = vand.u32 %v1226, 4294901760
    %v1228 = vsub.f32 %v1226, %v1227
    %v1229 = vand.u32 %v1228, 4294901760
    %1230 = vmatmul.mubr.f32.gmra.mxu0 %v1229
    %v1231 = vpop.f32.mrf.mxu0
    %v1232 = vadd.f32 %v108, %v1231
    %v1233 = vpop.f32.mrf.mxu0
    %1234 = vdwg.mxu0
    %1235 = vmatprep.subr.mxu0 0.0
    %v1236 = vand.u32 %v94, 4294901760
    %v1237 = vsub.f32 %v94, %v1236
    %v1238 = vand.u32 %v1237, 4294901760
    %v1239 = vsub.f32 %v1237, %v1238
    %v1240 = vand.u32 %v1239, 4294901760
    %1241 = vmatpush1.msra.mxu0 %v1240
    %1242 = vmatprep.subr.mxu0 0.0
    %v1243 = vand.u32 %v91, 4294901760
    %v1244 = vsub.f32 %v91, %v1243
    %v1245 = vand.u32 %v1244, 4294901760
    %v1246 = vsub.f32 %v1244, %v1245
    %v1247 = vand.u32 %v1246, 4294901760
    %1248 = vmatpush1.msra.mxu0 %v1247
    %1249 = vmatprep.subr.mxu0 0.0
    %v1250 = vand.u32 %v88, 4294901760
    %v1251 = vsub.f32 %v88, %v1250
    %v1252 = vand.u32 %v1251, 4294901760
    %v1253 = vsub.f32 %v1251, %v1252
    %v1254 = vand.u32 %v1253, 4294901760
    %1255 = vmatpush1.msra.mxu0 %v1254
    %1256 = vmatprep.subr.mxu0 0.0
    %v1257 = vand.u32 %v85, 4294901760
    %v1258 = vsub.f32 %v85, %v1257
    %v1259 = vand.u32 %v1258, 4294901760
    %v1260 = vsub.f32 %v1258, %v1259
    %v1261 = vand.u32 %v1260, 4294901760
    %1262 = vmatpush1.msra.mxu0 %v1261
    %1263 = vmatprep.subr.mxu0 0.0
    %v1264 = vand.u32 %v82, 4294901760
    %v1265 = vsub.f32 %v82, %v1264
    %v1266 = vand.u32 %v1265, 4294901760
    %v1267 = vsub.f32 %v1265, %v1266
    %v1268 = vand.u32 %v1267, 4294901760
    %1269 = vmatpush1.msra.mxu0 %v1268
    %1270 = vmatprep.subr.mxu0 0.0
    %v1271 = vand.u32 %v79, 4294901760
    %v1272 = vsub.f32 %v79, %v1271
    %v1273 = vand.u32 %v1272, 4294901760
    %v1274 = vsub.f32 %v1272, %v1273
    %v1275 = vand.u32 %v1274, 4294901760
    %1276 = vmatpush1.msra.mxu0 %v1275
    %1277 = vmatprep.subr.mxu0 0.0
    %v1278 = vand.u32 %v76, 4294901760
    %v1279 = vsub.f32 %v76, %v1278
    %v1280 = vand.u32 %v1279, 4294901760
    %v1281 = vsub.f32 %v1279, %v1280
    %v1282 = vand.u32 %v1281, 4294901760
    %1283 = vmatpush1.msra.mxu0 %v1282
    %1284 = vmatprep.subr.mxu0 0.0
    %v1285 = vand.u32 %v73, 4294901760
    %v1286 = vsub.f32 %v73, %v1285
    %v1287 = vand.u32 %v1286, 4294901760
    %v1288 = vsub.f32 %v1286, %v1287
    %v1289 = vand.u32 %v1288, 4294901760
    %1290 = vmatpush1.msra.mxu0 %v1289
    %1291 = vmatprep.subr.mxu0 0.0
    %v1292 = vand.u32 %v70, 4294901760
    %v1293 = vsub.f32 %v70, %v1292
    %v1294 = vand.u32 %v1293, 4294901760
    %v1295 = vsub.f32 %v1293, %v1294
    %v1296 = vand.u32 %v1295, 4294901760
    %1297 = vmatpush1.msra.mxu0 %v1296
    %1298 = vmatprep.subr.mxu0 0.0
    %v1299 = vand.u32 %v67, 4294901760
    %v1300 = vsub.f32 %v67, %v1299
    %v1301 = vand.u32 %v1300, 4294901760
    %v1302 = vsub.f32 %v1300, %v1301
    %v1303 = vand.u32 %v1302, 4294901760
    %1304 = vmatpush1.msra.mxu0 %v1303
    %1305 = vmatprep.subr.mxu0 0.0
    %v1306 = vand.u32 %v64, 4294901760
    %v1307 = vsub.f32 %v64, %v1306
    %v1308 = vand.u32 %v1307, 4294901760
    %v1309 = vsub.f32 %v1307, %v1308
    %v1310 = vand.u32 %v1309, 4294901760
    %1311 = vmatpush1.msra.mxu0 %v1310
    %1312 = vmatprep.subr.mxu0 0.0
    %v1313 = vand.u32 %v61, 4294901760
    %v1314 = vsub.f32 %v61, %v1313
    %v1315 = vand.u32 %v1314, 4294901760
    %v1316 = vsub.f32 %v1314, %v1315
    %v1317 = vand.u32 %v1316, 4294901760
    %1318 = vmatpush1.msra.mxu0 %v1317
    %1319 = vmatprep.subr.mxu0 0.0
    %v1320 = vand.u32 %v58, 4294901760
    %v1321 = vsub.f32 %v58, %v1320
    %v1322 = vand.u32 %v1321, 4294901760
    %v1323 = vsub.f32 %v1321, %v1322
    %v1324 = vand.u32 %v1323, 4294901760
    %1325 = vmatpush1.msra.mxu0 %v1324
    %1326 = vmatprep.subr.mxu0 0.0
    %v1327 = vand.u32 %v55, 4294901760
    %v1328 = vsub.f32 %v55, %v1327
    %v1329 = vand.u32 %v1328, 4294901760
    %v1330 = vsub.f32 %v1328, %v1329
    %v1331 = vand.u32 %v1330, 4294901760
    %1332 = vmatpush1.msra.mxu0 %v1331
    %1333 = vmatprep.subr.mxu0 0.0
    %v1334 = vand.u32 %v52, 4294901760
    %v1335 = vsub.f32 %v52, %v1334
    %v1336 = vand.u32 %v1335, 4294901760
    %v1337 = vsub.f32 %v1335, %v1336
    %v1338 = vand.u32 %v1337, 4294901760
    %1339 = vmatpush1.msra.mxu0 %v1338
    %1340 = vmatprep.subr.mxu0 0.0
    %v1341 = vand.u32 %v49, 4294901760
    %v1342 = vsub.f32 %v49, %v1341
    %v1343 = vand.u32 %v1342, 4294901760
    %v1344 = vsub.f32 %v1342, %v1343
    %v1345 = vand.u32 %v1344, 4294901760
    %1346 = vmatpush1.msra.mxu0 %v1345
    %1347 = vmatprep.subr.mxu0 0.0
    %1348 = vmatpush2.msra.mxu0 0.0
    %1349 = vmatprep.subr.mxu0 0.0
    %1350 = vmatpush2.msra.mxu0 0.0
    %1351 = vmatprep.subr.mxu0 0.0
    %1352 = vmatpush2.msra.mxu0 0.0
    %1353 = vmatprep.subr.mxu0 0.0
    %1354 = vmatpush2.msra.mxu0 0.0
    %1355 = vmatprep.subr.mxu0 0.0
    %1356 = vmatpush2.msra.mxu0 0.0
    %1357 = vmatprep.subr.mxu0 0.0
    %1358 = vmatpush2.msra.mxu0 0.0
    %1359 = vmatprep.subr.mxu0 0.0
    %1360 = vmatpush2.msra.mxu0 0.0
    %1361 = vmatprep.subr.mxu0 0.0
    %1362 = vmatpush2.msra.mxu0 0.0
    %1363 = vmatprep.subr.mxu0 0.0
    %1364 = vmatpush2.msra.mxu0 0.0
    %1365 = vmatprep.subr.mxu0 0.0
    %1366 = vmatpush2.msra.mxu0 0.0
    %1367 = vmatprep.subr.mxu0 0.0
    %1368 = vmatpush2.msra.mxu0 0.0
    %1369 = vmatprep.subr.mxu0 0.0
    %1370 = vmatpush2.msra.mxu0 0.0
    %1371 = vmatprep.subr.mxu0 0.0
    %1372 = vmatpush2.msra.mxu0 0.0
    %1373 = vmatprep.subr.mxu0 0.0
    %1374 = vmatpush2.msra.mxu0 0.0
    %1375 = vmatprep.subr.mxu0 0.0
    %1376 = vmatpush2.msra.mxu0 0.0
    %1377 = vmatprep.subr.mxu0 0.0
    %1378 = vmatpush2.msra.mxu0 0.0
    %1379 = vmatprep.mubr.f32.mxu0 0.0
    %v1380 = vand.u32 %v43, 4294901760
    %1381 = vmatmul.mubr.f32.gmra.mxu0 %v1380
    %v1382 = vpop.f32.mrf.mxu0
    %v1383 = vadd.f32 %v1202, %v1382
    %v1384 = vpop.f32.mrf.mxu0
    %1385 = vmatprep.mubr.f32.mxu0 0.0
    %v1386 = vand.u32 %v44, 4294901760
    %1387 = vmatmul.mubr.f32.gmra.mxu0 %v1386
    %v1388 = vpop.f32.mrf.mxu0
    %v1389 = vadd.f32 %v1212, %v1388
    %v1390 = vpop.f32.mrf.mxu0
    %1391 = vmatprep.mubr.f32.mxu0 0.0
    %v1392 = vand.u32 %v45, 4294901760
    %1393 = vmatmul.mubr.f32.gmra.mxu0 %v1392
    %v1394 = vpop.f32.mrf.mxu0
    %v1395 = vadd.f32 %v1222, %v1394
    %v1396 = vpop.f32.mrf.mxu0
    %1397 = vmatprep.mubr.f32.mxu0 0.0
    %v1398 = vand.u32 %v46, 4294901760
    %1399 = vmatmul.mubr.f32.gmra.mxu0 %v1398
    %v1400 = vpop.f32.mrf.mxu0
    %v1401 = vadd.f32 %v1232, %v1400
    %v1402 = vpop.f32.mrf.mxu0
    %1403 = vdwg.mxu0
    %1404 = vmatprep.subr.mxu0 0.0
    %v1405 = vand.u32 %v94, 4294901760
    %v1406 = vsub.f32 %v94, %v1405
    %1407 = vmatpush1.msra.mxu0 %v1406
    %1408 = vmatprep.subr.mxu0 0.0
    %v1409 = vand.u32 %v91, 4294901760
    %v1410 = vsub.f32 %v91, %v1409
    %1411 = vmatpush1.msra.mxu0 %v1410
    %1412 = vmatprep.subr.mxu0 0.0
    %v1413 = vand.u32 %v88, 4294901760
    %v1414 = vsub.f32 %v88, %v1413
    %1415 = vmatpush1.msra.mxu0 %v1414
    %1416 = vmatprep.subr.mxu0 0.0
    %v1417 = vand.u32 %v85, 4294901760
    %v1418 = vsub.f32 %v85, %v1417
    %1419 = vmatpush1.msra.mxu0 %v1418
    %1420 = vmatprep.subr.mxu0 0.0
    %v1421 = vand.u32 %v82, 4294901760
    %v1422 = vsub.f32 %v82, %v1421
    %1423 = vmatpush1.msra.mxu0 %v1422
    %1424 = vmatprep.subr.mxu0 0.0
    %v1425 = vand.u32 %v79, 4294901760
    %v1426 = vsub.f32 %v79, %v1425
    %1427 = vmatpush1.msra.mxu0 %v1426
    %1428 = vmatprep.subr.mxu0 0.0
    %v1429 = vand.u32 %v76, 4294901760
    %v1430 = vsub.f32 %v76, %v1429
    %1431 = vmatpush1.msra.mxu0 %v1430
    %1432 = vmatprep.subr.mxu0 0.0
    %v1433 = vand.u32 %v73, 4294901760
    %v1434 = vsub.f32 %v73, %v1433
    %1435 = vmatpush1.msra.mxu0 %v1434
    %1436 = vmatprep.subr.mxu0 0.0
    %v1437 = vand.u32 %v70, 4294901760
    %v1438 = vsub.f32 %v70, %v1437
    %1439 = vmatpush1.msra.mxu0 %v1438
    %1440 = vmatprep.subr.mxu0 0.0
    %v1441 = vand.u32 %v67, 4294901760
    %v1442 = vsub.f32 %v67, %v1441
    %1443 = vmatpush1.msra.mxu0 %v1442
    %1444 = vmatprep.subr.mxu0 0.0
    %v1445 = vand.u32 %v64, 4294901760
    %v1446 = vsub.f32 %v64, %v1445
    %1447 = vmatpush1.msra.mxu0 %v1446
    %1448 = vmatprep.subr.mxu0 0.0
    %v1449 = vand.u32 %v61, 4294901760
    %v1450 = vsub.f32 %v61, %v1449
    %1451 = vmatpush1.msra.mxu0 %v1450
    %1452 = vmatprep.subr.mxu0 0.0
    %v1453 = vand.u32 %v58, 4294901760
    %v1454 = vsub.f32 %v58, %v1453
    %1455 = vmatpush1.msra.mxu0 %v1454
    %1456 = vmatprep.subr.mxu0 0.0
    %v1457 = vand.u32 %v55, 4294901760
    %v1458 = vsub.f32 %v55, %v1457
    %1459 = vmatpush1.msra.mxu0 %v1458
    %1460 = vmatprep.subr.mxu0 0.0
    %v1461 = vand.u32 %v52, 4294901760
    %v1462 = vsub.f32 %v52, %v1461
    %1463 = vmatpush1.msra.mxu0 %v1462
    %1464 = vmatprep.subr.mxu0 0.0
    %v1465 = vand.u32 %v49, 4294901760
    %v1466 = vsub.f32 %v49, %v1465
    %1467 = vmatpush1.msra.mxu0 %v1466
    %1468 = vmatprep.subr.mxu0 0.0
    %1469 = vmatpush2.msra.mxu0 0.0
    %1470 = vmatprep.subr.mxu0 0.0
    %1471 = vmatpush2.msra.mxu0 0.0
    %1472 = vmatprep.subr.mxu0 0.0
    %1473 = vmatpush2.msra.mxu0 0.0
    %1474 = vmatprep.subr.mxu0 0.0
    %1475 = vmatpush2.msra.mxu0 0.0
    %1476 = vmatprep.subr.mxu0 0.0
    %1477 = vmatpush2.msra.mxu0 0.0
    %1478 = vmatprep.subr.mxu0 0.0
    %1479 = vmatpush2.msra.mxu0 0.0
    %1480 = vmatprep.subr.mxu0 0.0
    %1481 = vmatpush2.msra.mxu0 0.0
    %1482 = vmatprep.subr.mxu0 0.0
    %1483 = vmatpush2.msra.mxu0 0.0
    %1484 = vmatprep.subr.mxu0 0.0
    %1485 = vmatpush2.msra.mxu0 0.0
    %1486 = vmatprep.subr.mxu0 0.0
    %1487 = vmatpush2.msra.mxu0 0.0
    %1488 = vmatprep.subr.mxu0 0.0
    %1489 = vmatpush2.msra.mxu0 0.0
    %1490 = vmatprep.subr.mxu0 0.0
    %1491 = vmatpush2.msra.mxu0 0.0
    %1492 = vmatprep.subr.mxu0 0.0
    %1493 = vmatpush2.msra.mxu0 0.0
    %1494 = vmatprep.subr.mxu0 0.0
    %1495 = vmatpush2.msra.mxu0 0.0
    %1496 = vmatprep.subr.mxu0 0.0
    %1497 = vmatpush2.msra.mxu0 0.0
    %1498 = vmatprep.subr.mxu0 0.0
    %1499 = vmatpush2.msra.mxu0 0.0
    %1500 = vmatprep.mubr.f32.mxu0 0.0
    %v1501 = vand.u32 %v43, 4294901760
    %v1502 = vsub.f32 %v43, %v1501
    %1503 = vmatmul.mubr.f32.gmra.mxu0 %v1502
    %v1504 = vpop.f32.mrf.mxu0
    %v1505 = vadd.f32 %v1383, %v1504
    %v1506 = vpop.f32.mrf.mxu0
    %1507 = vmatprep.mubr.f32.mxu0 0.0
    %v1508 = vand.u32 %v44, 4294901760
    %v1509 = vsub.f32 %v44, %v1508
    %1510 = vmatmul.mubr.f32.gmra.mxu0 %v1509
    %v1511 = vpop.f32.mrf.mxu0
    %v1512 = vadd.f32 %v1389, %v1511
    %v1513 = vpop.f32.mrf.mxu0
    %1514 = vmatprep.mubr.f32.mxu0 0.0
    %v1515 = vand.u32 %v45, 4294901760
    %v1516 = vsub.f32 %v45, %v1515
    %1517 = vmatmul.mubr.f32.gmra.mxu0 %v1516
    %v1518 = vpop.f32.mrf.mxu0
    %v1519 = vadd.f32 %v1395, %v1518
    %v1520 = vpop.f32.mrf.mxu0
    %1521 = vmatprep.mubr.f32.mxu0 0.0
    %v1522 = vand.u32 %v46, 4294901760
    %v1523 = vsub.f32 %v46, %v1522
    %1524 = vmatmul.mubr.f32.gmra.mxu0 %v1523
    %v1525 = vpop.f32.mrf.mxu0
    %v1526 = vadd.f32 %v1401, %v1525
    %v1527 = vpop.f32.mrf.mxu0
    %1528 = vdwg.mxu0
    %1529 = vmatprep.subr.mxu0 0.0
    %v1530 = vand.u32 %v94, 4294901760
    %1531 = vmatpush1.msra.mxu0 %v1530
    %1532 = vmatprep.subr.mxu0 0.0
    %v1533 = vand.u32 %v91, 4294901760
    %1534 = vmatpush1.msra.mxu0 %v1533
    %1535 = vmatprep.subr.mxu0 0.0
    %v1536 = vand.u32 %v88, 4294901760
    %1537 = vmatpush1.msra.mxu0 %v1536
    %1538 = vmatprep.subr.mxu0 0.0
    %v1539 = vand.u32 %v85, 4294901760
    %1540 = vmatpush1.msra.mxu0 %v1539
    %1541 = vmatprep.subr.mxu0 0.0
    %v1542 = vand.u32 %v82, 4294901760
    %1543 = vmatpush1.msra.mxu0 %v1542
    %1544 = vmatprep.subr.mxu0 0.0
    %v1545 = vand.u32 %v79, 4294901760
    %1546 = vmatpush1.msra.mxu0 %v1545
    %1547 = vmatprep.subr.mxu0 0.0
    %v1548 = vand.u32 %v76, 4294901760
    %1549 = vmatpush1.msra.mxu0 %v1548
    %1550 = vmatprep.subr.mxu0 0.0
    %v1551 = vand.u32 %v73, 4294901760
    %1552 = vmatpush1.msra.mxu0 %v1551
    %1553 = vmatprep.subr.mxu0 0.0
    %v1554 = vand.u32 %v70, 4294901760
    %1555 = vmatpush1.msra.mxu0 %v1554
    %1556 = vmatprep.subr.mxu0 0.0
    %v1557 = vand.u32 %v67, 4294901760
    %1558 = vmatpush1.msra.mxu0 %v1557
    %1559 = vmatprep.subr.mxu0 0.0
    %v1560 = vand.u32 %v64, 4294901760
    %1561 = vmatpush1.msra.mxu0 %v1560
    %1562 = vmatprep.subr.mxu0 0.0
    %v1563 = vand.u32 %v61, 4294901760
    %1564 = vmatpush1.msra.mxu0 %v1563
    %1565 = vmatprep.subr.mxu0 0.0
    %v1566 = vand.u32 %v58, 4294901760
    %1567 = vmatpush1.msra.mxu0 %v1566
    %1568 = vmatprep.subr.mxu0 0.0
    %v1569 = vand.u32 %v55, 4294901760
    %1570 = vmatpush1.msra.mxu0 %v1569
    %1571 = vmatprep.subr.mxu0 0.0
    %v1572 = vand.u32 %v52, 4294901760
    %1573 = vmatpush1.msra.mxu0 %v1572
    %1574 = vmatprep.subr.mxu0 0.0
    %v1575 = vand.u32 %v49, 4294901760
    %1576 = vmatpush1.msra.mxu0 %v1575
    %1577 = vmatprep.subr.mxu0 0.0
    %1578 = vmatpush2.msra.mxu0 0.0
    %1579 = vmatprep.subr.mxu0 0.0
    %1580 = vmatpush2.msra.mxu0 0.0
    %1581 = vmatprep.subr.mxu0 0.0
    %1582 = vmatpush2.msra.mxu0 0.0
    %1583 = vmatprep.subr.mxu0 0.0
    %1584 = vmatpush2.msra.mxu0 0.0
    %1585 = vmatprep.subr.mxu0 0.0
    %1586 = vmatpush2.msra.mxu0 0.0
    %1587 = vmatprep.subr.mxu0 0.0
    %1588 = vmatpush2.msra.mxu0 0.0
    %1589 = vmatprep.subr.mxu0 0.0
    %1590 = vmatpush2.msra.mxu0 0.0
    %1591 = vmatprep.subr.mxu0 0.0
    %1592 = vmatpush2.msra.mxu0 0.0
    %1593 = vmatprep.subr.mxu0 0.0
    %1594 = vmatpush2.msra.mxu0 0.0
    %1595 = vmatprep.subr.mxu0 0.0
    %1596 = vmatpush2.msra.mxu0 0.0
    %1597 = vmatprep.subr.mxu0 0.0
    %1598 = vmatpush2.msra.mxu0 0.0
    %1599 = vmatprep.subr.mxu0 0.0
    %1600 = vmatpush2.msra.mxu0 0.0
    %1601 = vmatprep.subr.mxu0 0.0
    %1602 = vmatpush2.msra.mxu0 0.0
    %1603 = vmatprep.subr.mxu0 0.0
    %1604 = vmatpush2.msra.mxu0 0.0
    %1605 = vmatprep.subr.mxu0 0.0
    %1606 = vmatpush2.msra.mxu0 0.0
    %1607 = vmatprep.subr.mxu0 0.0
    %1608 = vmatpush2.msra.mxu0 0.0
    %1609 = vmatprep.mubr.f32.mxu0 0.0
    %v1610 = vand.u32 %v43, 4294901760
    %v1611 = vsub.f32 %v43, %v1610
    %v1612 = vand.u32 %v1611, 4294901760
    %1613 = vmatmul.mubr.f32.gmra.mxu0 %v1612
    %v1614 = vpop.f32.mrf.mxu0
    %v1615 = vadd.f32 %v1505, %v1614
    %v1616 = vpop.f32.mrf.mxu0
    %1617 = vmatprep.mubr.f32.mxu0 0.0
    %v1618 = vand.u32 %v44, 4294901760
    %v1619 = vsub.f32 %v44, %v1618
    %v1620 = vand.u32 %v1619, 4294901760
    %1621 = vmatmul.mubr.f32.gmra.mxu0 %v1620
    %v1622 = vpop.f32.mrf.mxu0
    %v1623 = vadd.f32 %v1512, %v1622
    %v1624 = vpop.f32.mrf.mxu0
    %1625 = vmatprep.mubr.f32.mxu0 0.0
    %v1626 = vand.u32 %v45, 4294901760
    %v1627 = vsub.f32 %v45, %v1626
    %v1628 = vand.u32 %v1627, 4294901760
    %1629 = vmatmul.mubr.f32.gmra.mxu0 %v1628
    %v1630 = vpop.f32.mrf.mxu0
    %v1631 = vadd.f32 %v1519, %v1630
    %v1632 = vpop.f32.mrf.mxu0
    %1633 = vmatprep.mubr.f32.mxu0 0.0
    %v1634 = vand.u32 %v46, 4294901760
    %v1635 = vsub.f32 %v46, %v1634
    %v1636 = vand.u32 %v1635, 4294901760
    %1637 = vmatmul.mubr.f32.gmra.mxu0 %v1636
    %v1638 = vpop.f32.mrf.mxu0
    %v1639 = vadd.f32 %v1526, %v1638
    %v1640 = vpop.f32.mrf.mxu0
    %1641 = vdwg.mxu0
    %1642 = vmatprep.subr.mxu0 0.0
    %v1643 = vand.u32 %v94, 4294901760
    %v1644 = vsub.f32 %v94, %v1643
    %v1645 = vand.u32 %v1644, 4294901760
    %1646 = vmatpush1.msra.mxu0 %v1645
    %1647 = vmatprep.subr.mxu0 0.0
    %v1648 = vand.u32 %v91, 4294901760
    %v1649 = vsub.f32 %v91, %v1648
    %v1650 = vand.u32 %v1649, 4294901760
    %1651 = vmatpush1.msra.mxu0 %v1650
    %1652 = vmatprep.subr.mxu0 0.0
    %v1653 = vand.u32 %v88, 4294901760
    %v1654 = vsub.f32 %v88, %v1653
    %v1655 = vand.u32 %v1654, 4294901760
    %1656 = vmatpush1.msra.mxu0 %v1655
    %1657 = vmatprep.subr.mxu0 0.0
    %v1658 = vand.u32 %v85, 4294901760
    %v1659 = vsub.f32 %v85, %v1658
    %v1660 = vand.u32 %v1659, 4294901760
    %1661 = vmatpush1.msra.mxu0 %v1660
    %1662 = vmatprep.subr.mxu0 0.0
    %v1663 = vand.u32 %v82, 4294901760
    %v1664 = vsub.f32 %v82, %v1663
    %v1665 = vand.u32 %v1664, 4294901760
    %1666 = vmatpush1.msra.mxu0 %v1665
    %1667 = vmatprep.subr.mxu0 0.0
    %v1668 = vand.u32 %v79, 4294901760
    %v1669 = vsub.f32 %v79, %v1668
    %v1670 = vand.u32 %v1669, 4294901760
    %1671 = vmatpush1.msra.mxu0 %v1670
    %1672 = vmatprep.subr.mxu0 0.0
    %v1673 = vand.u32 %v76, 4294901760
    %v1674 = vsub.f32 %v76, %v1673
    %v1675 = vand.u32 %v1674, 4294901760
    %1676 = vmatpush1.msra.mxu0 %v1675
    %1677 = vmatprep.subr.mxu0 0.0
    %v1678 = vand.u32 %v73, 4294901760
    %v1679 = vsub.f32 %v73, %v1678
    %v1680 = vand.u32 %v1679, 4294901760
    %1681 = vmatpush1.msra.mxu0 %v1680
    %1682 = vmatprep.subr.mxu0 0.0
    %v1683 = vand.u32 %v70, 4294901760
    %v1684 = vsub.f32 %v70, %v1683
    %v1685 = vand.u32 %v1684, 4294901760
    %1686 = vmatpush1.msra.mxu0 %v1685
    %1687 = vmatprep.subr.mxu0 0.0
    %v1688 = vand.u32 %v67, 4294901760
    %v1689 = vsub.f32 %v67, %v1688
    %v1690 = vand.u32 %v1689, 4294901760
    %1691 = vmatpush1.msra.mxu0 %v1690
    %1692 = vmatprep.subr.mxu0 0.0
    %v1693 = vand.u32 %v64, 4294901760
    %v1694 = vsub.f32 %v64, %v1693
    %v1695 = vand.u32 %v1694, 4294901760
    %1696 = vmatpush1.msra.mxu0 %v1695
    %1697 = vmatprep.subr.mxu0 0.0
    %v1698 = vand.u32 %v61, 4294901760
    %v1699 = vsub.f32 %v61, %v1698
    %v1700 = vand.u32 %v1699, 4294901760
    %1701 = vmatpush1.msra.mxu0 %v1700
    %1702 = vmatprep.subr.mxu0 0.0
    %v1703 = vand.u32 %v58, 4294901760
    %v1704 = vsub.f32 %v58, %v1703
    %v1705 = vand.u32 %v1704, 4294901760
    %1706 = vmatpush1.msra.mxu0 %v1705
    %1707 = vmatprep.subr.mxu0 0.0
    %v1708 = vand.u32 %v55, 4294901760
    %v1709 = vsub.f32 %v55, %v1708
    %v1710 = vand.u32 %v1709, 4294901760
    %1711 = vmatpush1.msra.mxu0 %v1710
    %1712 = vmatprep.subr.mxu0 0.0
    %v1713 = vand.u32 %v52, 4294901760
    %v1714 = vsub.f32 %v52, %v1713
    %v1715 = vand.u32 %v1714, 4294901760
    %1716 = vmatpush1.msra.mxu0 %v1715
    %1717 = vmatprep.subr.mxu0 0.0
    %v1718 = vand.u32 %v49, 4294901760
    %v1719 = vsub.f32 %v49, %v1718
    %v1720 = vand.u32 %v1719, 4294901760
    %1721 = vmatpush1.msra.mxu0 %v1720
    %1722 = vmatprep.subr.mxu0 0.0
    %1723 = vmatpush2.msra.mxu0 0.0
    %1724 = vmatprep.subr.mxu0 0.0
    %1725 = vmatpush2.msra.mxu0 0.0
    %1726 = vmatprep.subr.mxu0 0.0
    %1727 = vmatpush2.msra.mxu0 0.0
    %1728 = vmatprep.subr.mxu0 0.0
    %1729 = vmatpush2.msra.mxu0 0.0
    %1730 = vmatprep.subr.mxu0 0.0
    %1731 = vmatpush2.msra.mxu0 0.0
    %1732 = vmatprep.subr.mxu0 0.0
    %1733 = vmatpush2.msra.mxu0 0.0
    %1734 = vmatprep.subr.mxu0 0.0
    %1735 = vmatpush2.msra.mxu0 0.0
    %1736 = vmatprep.subr.mxu0 0.0
    %1737 = vmatpush2.msra.mxu0 0.0
    %1738 = vmatprep.subr.mxu0 0.0
    %1739 = vmatpush2.msra.mxu0 0.0
    %1740 = vmatprep.subr.mxu0 0.0
    %1741 = vmatpush2.msra.mxu0 0.0
    %1742 = vmatprep.subr.mxu0 0.0
    %1743 = vmatpush2.msra.mxu0 0.0
    %1744 = vmatprep.subr.mxu0 0.0
    %1745 = vmatpush2.msra.mxu0 0.0
    %1746 = vmatprep.subr.mxu0 0.0
    %1747 = vmatpush2.msra.mxu0 0.0
    %1748 = vmatprep.subr.mxu0 0.0
    %1749 = vmatpush2.msra.mxu0 0.0
    %1750 = vmatprep.subr.mxu0 0.0
    %1751 = vmatpush2.msra.mxu0 0.0
    %1752 = vmatprep.subr.mxu0 0.0
    %1753 = vmatpush2.msra.mxu0 0.0
    %1754 = vmatprep.mubr.f32.mxu0 0.0
    %v1755 = vand.u32 %v43, 4294901760
    %1756 = vmatmul.mubr.f32.gmra.mxu0 %v1755
    %v1757 = vpop.f32.mrf.mxu0
    %v1758 = vadd.f32 %v1615, %v1757
    %v1759 = vpop.f32.mrf.mxu0
    %1760 = vmatprep.mubr.f32.mxu0 0.0
    %v1761 = vand.u32 %v44, 4294901760
    %1762 = vmatmul.mubr.f32.gmra.mxu0 %v1761
    %v1763 = vpop.f32.mrf.mxu0
    %v1764 = vadd.f32 %v1623, %v1763
    %v1765 = vpop.f32.mrf.mxu0
    %1766 = vmatprep.mubr.f32.mxu0 0.0
    %v1767 = vand.u32 %v45, 4294901760
    %1768 = vmatmul.mubr.f32.gmra.mxu0 %v1767
    %v1769 = vpop.f32.mrf.mxu0
    %v1770 = vadd.f32 %v1631, %v1769
    %v1771 = vpop.f32.mrf.mxu0
    %1772 = vmatprep.mubr.f32.mxu0 0.0
    %v1773 = vand.u32 %v46, 4294901760
    %1774 = vmatmul.mubr.f32.gmra.mxu0 %v1773
    %v1775 = vpop.f32.mrf.mxu0
    %v1776 = vadd.f32 %v1639, %v1775
    %v1777 = vpop.f32.mrf.mxu0
    %1778 = vdwg.mxu0
    %1779 = vmatprep.subr.mxu0 0.0
    %v1780 = vand.u32 %v94, 4294901760
    %1781 = vmatpush1.msra.mxu0 %v1780
    %1782 = vmatprep.subr.mxu0 0.0
    %v1783 = vand.u32 %v91, 4294901760
    %1784 = vmatpush1.msra.mxu0 %v1783
    %1785 = vmatprep.subr.mxu0 0.0
    %v1786 = vand.u32 %v88, 4294901760
    %1787 = vmatpush1.msra.mxu0 %v1786
    %1788 = vmatprep.subr.mxu0 0.0
    %v1789 = vand.u32 %v85, 4294901760
    %1790 = vmatpush1.msra.mxu0 %v1789
    %1791 = vmatprep.subr.mxu0 0.0
    %v1792 = vand.u32 %v82, 4294901760
    %1793 = vmatpush1.msra.mxu0 %v1792
    %1794 = vmatprep.subr.mxu0 0.0
    %v1795 = vand.u32 %v79, 4294901760
    %1796 = vmatpush1.msra.mxu0 %v1795
    %1797 = vmatprep.subr.mxu0 0.0
    %v1798 = vand.u32 %v76, 4294901760
    %1799 = vmatpush1.msra.mxu0 %v1798
    %1800 = vmatprep.subr.mxu0 0.0
    %v1801 = vand.u32 %v73, 4294901760
    %1802 = vmatpush1.msra.mxu0 %v1801
    %1803 = vmatprep.subr.mxu0 0.0
    %v1804 = vand.u32 %v70, 4294901760
    %1805 = vmatpush1.msra.mxu0 %v1804
    %1806 = vmatprep.subr.mxu0 0.0
    %v1807 = vand.u32 %v67, 4294901760
    %1808 = vmatpush1.msra.mxu0 %v1807
    %1809 = vmatprep.subr.mxu0 0.0
    %v1810 = vand.u32 %v64, 4294901760
    %1811 = vmatpush1.msra.mxu0 %v1810
    %1812 = vmatprep.subr.mxu0 0.0
    %v1813 = vand.u32 %v61, 4294901760
    %1814 = vmatpush1.msra.mxu0 %v1813
    %1815 = vmatprep.subr.mxu0 0.0
    %v1816 = vand.u32 %v58, 4294901760
    %1817 = vmatpush1.msra.mxu0 %v1816
    %1818 = vmatprep.subr.mxu0 0.0
    %v1819 = vand.u32 %v55, 4294901760
    %1820 = vmatpush1.msra.mxu0 %v1819
    %1821 = vmatprep.subr.mxu0 0.0
    %v1822 = vand.u32 %v52, 4294901760
    %1823 = vmatpush1.msra.mxu0 %v1822
    %1824 = vmatprep.subr.mxu0 0.0
    %v1825 = vand.u32 %v49, 4294901760
    %1826 = vmatpush1.msra.mxu0 %v1825
    %1827 = vmatprep.subr.mxu0 0.0
    %1828 = vmatpush2.msra.mxu0 0.0
    %1829 = vmatprep.subr.mxu0 0.0
    %1830 = vmatpush2.msra.mxu0 0.0
    %1831 = vmatprep.subr.mxu0 0.0
    %1832 = vmatpush2.msra.mxu0 0.0
    %1833 = vmatprep.subr.mxu0 0.0
    %1834 = vmatpush2.msra.mxu0 0.0
    %1835 = vmatprep.subr.mxu0 0.0
    %1836 = vmatpush2.msra.mxu0 0.0
    %1837 = vmatprep.subr.mxu0 0.0
    %1838 = vmatpush2.msra.mxu0 0.0
    %1839 = vmatprep.subr.mxu0 0.0
    %1840 = vmatpush2.msra.mxu0 0.0
    %1841 = vmatprep.subr.mxu0 0.0
    %1842 = vmatpush2.msra.mxu0 0.0
    %1843 = vmatprep.subr.mxu0 0.0
    %1844 = vmatpush2.msra.mxu0 0.0
    %1845 = vmatprep.subr.mxu0 0.0
    %1846 = vmatpush2.msra.mxu0 0.0
    %1847 = vmatprep.subr.mxu0 0.0
    %1848 = vmatpush2.msra.mxu0 0.0
    %1849 = vmatprep.subr.mxu0 0.0
    %1850 = vmatpush2.msra.mxu0 0.0
    %1851 = vmatprep.subr.mxu0 0.0
    %1852 = vmatpush2.msra.mxu0 0.0
    %1853 = vmatprep.subr.mxu0 0.0
    %1854 = vmatpush2.msra.mxu0 0.0
    %1855 = vmatprep.subr.mxu0 0.0
    %1856 = vmatpush2.msra.mxu0 0.0
    %1857 = vmatprep.subr.mxu0 0.0
    %1858 = vmatpush2.msra.mxu0 0.0
    %1859 = vmatprep.mubr.f32.mxu0 0.0
    %v1860 = vand.u32 %v43, 4294901760
    %1861 = vmatmul.mubr.f32.gmra.mxu0 %v1860
    %v1862 = vpop.f32.mrf.mxu0
    %v1863 = vadd.f32 %v1758, %v1862
    %v1864 = vpop.f32.mrf.mxu0
    %1865 = vmatprep.mubr.f32.mxu0 0.0
    %v1866 = vand.u32 %v44, 4294901760
    %1867 = vmatmul.mubr.f32.gmra.mxu0 %v1866
    %v1868 = vpop.f32.mrf.mxu0
    %v1869 = vadd.f32 %v1764, %v1868
    %v1870 = vpop.f32.mrf.mxu0
    %1871 = vmatprep.mubr.f32.mxu0 0.0
    %v1872 = vand.u32 %v45, 4294901760
    %1873 = vmatmul.mubr.f32.gmra.mxu0 %v1872
    %v1874 = vpop.f32.mrf.mxu0
    %v1875 = vadd.f32 %v1770, %v1874
    %v1876 = vpop.f32.mrf.mxu0
    %1877 = vmatprep.mubr.f32.mxu0 0.0
    %v1878 = vand.u32 %v46, 4294901760
    %1879 = vmatmul.mubr.f32.gmra.mxu0 %v1878
    %v1880 = vpop.f32.mrf.mxu0
    %v1881 = vadd.f32 %v1776, %v1880
    %v1882 = vpop.f32.mrf.mxu0
    %1883 = vdwg.mxu0
    %1884 = vst [vmem:[#allocation7] sm:$0xff] %v1089
    %1885 = vst [vmem:[#allocation7 + $0x8] sm:$0xff] %v1091
    %1886 = vst [vmem:[#allocation7 + $0x10] sm:$0xff] %v1863
    %1887 = vst [vmem:[#allocation7 + $0x18] sm:$0xff] %v1096
    %1888 = vst [vmem:[#allocation7 + $0x20] sm:$0xff] %v1098
    %1889 = vst [vmem:[#allocation7 + $0x28] sm:$0xff] %v1869
    %1890 = vst [vmem:[#allocation7 + $0x30] sm:$0xff] %v1103
    %1891 = vst [vmem:[#allocation7 + $0x38] sm:$0xff] %v1105
    %1892 = vst [vmem:[#allocation7 + $0x40] sm:$0xff] %v1875
    %1893 = vst [vmem:[#allocation7 + $0x48] sm:$0xff] %v1110
    %1894 = vst [vmem:[#allocation7 + $0x50] sm:$0xff] %v1112
    %1895 = vst [vmem:[#allocation7 + $0x58] sm:$0xff] %v1881
    // Predicated region
    $region22: #{tpu_custom_call.1} parent=1 // pred_check
      _
    $region23: #{tpu_custom_call.1} parent=1 // pred_check_branch
      %1897 = sbr.rel (0) target = $region25
    $region24: #{tpu_custom_call.1} parent=1 // pred_region
      %s1899 = ssub.s32 1536, 1536
      %1900 = vsyncadd [#allocation4], %s1899
      %s1901 = sshll.u32 [#allocation7], 4
      %s1902 = int_to_ptr.vmem [resolvable:$true] %s1901
      %1907 = dma.vmem_to_hbm [thread:$0]  %s1902, 1536, %s3, [#allocation4], 384, 384, 24
    $region25: #{tpu_custom_call.1} parent=1 // pred_fallthru
      _
    // Predicated region
    $region26: #{tpu_custom_call.1} parent=1 // pred_check
      _
    $region27: #{tpu_custom_call.1} parent=1 // pred_check_branch
      %1909 = sbr.rel (0) target = $region29
    $region28: #{tpu_custom_call.1} parent=1 // pred_region
      %1910 = dma.done [#allocation4], 1536
    $region29: #{tpu_custom_call.1} parent=1 // pred_fallthru
      _
    %1911 = vsyncpa [#allocation3], 1
    %1912 = vsyncpa [#allocation6], 1
    %1913 = vsyncpa [#allocation4], 1

</llo_original>
